<compile_context>
chip_gen: v5e
topology: v5e:2x2
jax: 0.10.0
libtpu: 0.0.40
codegen_flags: <defaults>
</compile_context>

<pallas_src>
import functools

import jax
import jax.numpy as jnp
from jax import lax
from jax.experimental import pallas as pl
from jax.experimental.pallas import tpu as pltpu

BN_EPS = 1e-5
_MATMUL_DTYPE = jnp.bfloat16     # MXU-native operand dtype; accumulation stays f32.
_WEIGHT_KEYS = ("w1", "b1", "s1", "t1", "wb", "bb", "sb", "tb", "wf", "bf")


def _round_up(x, m):
    return ((x + m - 1) // m) * m


# ----------------------------------------------------------------------------- kernel
def _mlp_skip_gauss_kernel(num_blocks, out_half,
                           x_ref, w1_ref, b1_ref, s1_ref, t1_ref,
                           wb_ref, bb_ref, sb_ref, tb_ref,
                           wf_ref, bf_ref,
                           out_ref):
    cdt = _MATMUL_DTYPE

    # Stem: Linear -> ReLU -> folded (eval-mode) BatchNorm affine.  Elementwise in f32.
    h = jnp.dot(x_ref[...].astype(cdt), w1_ref[...],
                preferred_element_type=jnp.float32) + b1_ref[...]
    h = jnp.maximum(h, 0.0)
    h = h * s1_ref[...] + t1_ref[...]

    # Residual MLP block: h = h + BN(ReLU(Linear(h)))  (BN folded to scale/shift).
    def block(i, h):
        hi = jnp.dot(h.astype(cdt), wb_ref[i],
                     preferred_element_type=jnp.float32) + bb_ref[i]
        hi = jnp.maximum(hi, 0.0)
        return h + hi * sb_ref[i] + tb_ref[i]

    if num_blocks > 8:
        # Deep nets: visible loop keeps vreg live-ranges bounded (avoids spill blow-up).
        h = lax.fori_loop(0, num_blocks, block, h, unroll=2)
    else:
        for i in range(num_blocks):
            h = block(i, h)

    # Head.  Padded layout: mu in lanes [0, out_half), sigma in [out_half, 2*out_half),
    # so softplus touches only the contiguous sigma half (no iota/where mask).
    out = jnp.dot(h.astype(cdt), wf_ref[...],
                  preferred_element_type=jnp.float32) + bf_ref[...]
    out_ref[:, :out_half] = out[:, :out_half]
    out_ref[:, out_half:] = jnp.logaddexp(out[:, out_half:], 0.0)


# ----------------------------------------------------------------------------- wrapper
def prepare_params(params):
    """One-time parameter preparation (hoisted out of the per-call hot path):
    lane-pad feature dims, fold eval-mode BatchNorm into (scale, shift), cast matmul
    weights to bf16, and lay the head out as [mu half | sigma half] (each padded to 128)."""
    input_dim, width = params["w1"].shape
    output_dim = params["wf"].shape[1] // 2
    nb = params["wb"].shape[0]
    wp = _round_up(width, 128)
    oph = _round_up(output_dim, 128)

    def pad2(a, r, c, dtype=jnp.float32):
        a = a.astype(jnp.float32)
        return jnp.pad(a, ((0, r - a.shape[0]), (0, c - a.shape[1]))).astype(dtype)

    def pad3(a, r, c, dtype=jnp.float32):
        a = a.astype(jnp.float32)
        return jnp.pad(a, ((0, 0), (0, r - a.shape[1]), (0, c - a.shape[2]))).astype(dtype)

    # Stem.  input_dim (contraction dim) stays un-padded; only output lanes are padded.
    w1 = pad2(params["w1"], input_dim, wp, _MATMUL_DTYPE)
    b1 = pad2(params["b1"].reshape(1, width), 1, wp)
    s1_raw = params["g1"] * lax.rsqrt(params["v1"] + BN_EPS)
    t1_raw = params["be1"] - params["m1"] * s1_raw
    s1 = pad2(s1_raw.reshape(1, width), 1, wp)
    t1 = pad2(t1_raw.reshape(1, width), 1, wp)

    # Residual blocks (stacked on a leading block axis).
    if nb > 0:
        wb = pad3(params["wb"], wp, wp, _MATMUL_DTYPE)
        bb = pad3(params["bb"].reshape(nb, 1, width), 1, wp)
        sb_raw = params["gb"] * lax.rsqrt(params["vb"] + BN_EPS)
        tb_raw = params["beb"] - params["mb"] * sb_raw
        sb = pad3(sb_raw.reshape(nb, 1, width), 1, wp)
        tb = pad3(tb_raw.reshape(nb, 1, width), 1, wp)
    else:
        # depth == 1: minimal well-shaped dummies; the kernel never reads them.
        wb = jnp.zeros((1, 8, 128), _MATMUL_DTYPE)
        bb = jnp.zeros((1, 1, 128), jnp.float32)
        sb = jnp.zeros((1, 1, 128), jnp.float32)
        tb = jnp.zeros((1, 1, 128), jnp.float32)

    # Head: mu columns -> [0, output_dim), sigma columns -> [oph, oph + output_dim).
    wf_f32 = params["wf"].astype(jnp.float32)
    bf_f32 = params["bf"].reshape(1, 2 * output_dim).astype(jnp.float32)
    wf = jnp.zeros((wp, 2 * oph), jnp.float32)
    wf = wf.at[:width, :output_dim].set(wf_f32[:, :output_dim])
    wf = wf.at[:width, oph:oph + output_dim].set(wf_f32[:, output_dim:])
    wf = wf.astype(_MATMUL_DTYPE)
    bf = jnp.zeros((1, 2 * oph), jnp.float32)
    bf = bf.at[:, :output_dim].set(bf_f32[:, :output_dim])
    bf = bf.at[:, oph:oph + output_dim].set(bf_f32[:, output_dim:])

    return dict(w1=w1, b1=b1, s1=s1, t1=t1, wb=wb, bb=bb, sb=sb, tb=tb, wf=wf, bf=bf,
                input_dim=input_dim, output_dim=output_dim, width=width,
                wp=wp, oph=oph, nb=nb)


def mlp_skip_gauss_forward(x, prep, *, flatten_image, tile_b=None):
    input_dim = prep["input_dim"]
    output_dim = prep["output_dim"]
    wp, oph, nb = prep["wp"], prep["oph"], prep["nb"]
    op2 = 2 * oph

    if flatten_image:
        x = x.reshape(-1, input_dim)        # same as torch .view(-1, input_dim)
    x = x.astype(jnp.float32)
    batch = x.shape[0]

    weights = tuple(prep[k] for k in _WEIGHT_KEYS)
    weight_bytes = sum(int(a.size) * a.dtype.itemsize for a in weights)

    # ---- generation-aware VMEM budget -------------------------------------------------
    try:
        vmem_capacity = pltpu.get_tpu_info().vmem_capacity_bytes
    except Exception:
        vmem_capacity = 64 << 20                      # conservative (v7x per-TC) fallback
    vmem_cap = min(int(vmem_capacity * 0.8), 100 << 20)   # leave Mosaic scratch headroom

    # ---- derive batch tile from VMEM remaining after resident weights -----------------
    if tile_b is None:
        headroom = 8 << 20
        # per-row bytes: x + out tiles (double-buffered, f32) + activation working set.
        per_row_bytes = 4 * (2 * input_dim + 2 * op2 + 4 * wp + op2)
        avail = max(vmem_cap - 2 * weight_bytes - headroom, 0)
        tile_b = max(avail // max(per_row_bytes, 1), 8)
        tile_b = min(tile_b, 2048, _round_up(batch, 8))
        tile_b = max((tile_b // 8) * 8, 8)
        # v7x megacore: keep at least two grid steps so both TensorCores get work.
        if batch >= 16 and _round_up(batch, tile_b) // tile_b < 2:
            tile_b = max(_round_up((batch + 1) // 2, 8), 8)
    tile_b = max(8, _round_up(int(tile_b), 8))
    pb = _round_up(batch, tile_b)

    xp = jnp.pad(x, ((0, pb - batch), (0, 0)))        # pad batch only; feature dim untouched

    xout_tile_bytes = 4 * tile_b * (2 * input_dim + 2 * op2)     # double-buffered x/out tiles
    work_bytes = 4 * tile_b * (4 * wp + op2)                     # activation working set
    vmem_limit = int(min(max(2 * weight_bytes + xout_tile_bytes + work_bytes + (8 << 20),
                             32 << 20), vmem_cap))

    cost = pl.CostEstimate(
        flops=2 * pb * (input_dim * wp + nb * wp * wp + wp * op2),
        transcendentals=2 * pb * oph,
        bytes_accessed=weight_bytes + 4 * pb * input_dim + 4 * pb * op2,
    )

    kernel = functools.partial(_mlp_skip_gauss_kernel, nb, oph)
    grid = (pb // tile_b,)

    def run(single_buffer_weights):
        def resident_spec(arr):
            zeros = (0,) * arr.ndim
            imap = lambda i, z=zeros: z
            if single_buffer_weights:
                # Constant block index -> no need for double-buffering; halve the footprint.
                return pl.BlockSpec(arr.shape, imap, pipeline_mode=pl.Buffered(1))
            return pl.BlockSpec(arr.shape, imap)

        in_specs = [pl.BlockSpec((tile_b, input_dim), lambda i: (i, 0))]   # pipelined x tile
        in_specs += [resident_spec(a) for a in weights]                    # resident weights

        return pl.pallas_call(
            kernel,
            out_shape=jax.ShapeDtypeStruct((pb, op2), jnp.float32),
            grid=grid,
            in_specs=in_specs,
            out_specs=pl.BlockSpec((tile_b, op2), lambda i: (i, 0)),       # lane-dense output
            compiler_params=pltpu.CompilerParams(
                dimension_semantics=("parallel",),
                vmem_limit_bytes=vmem_limit),
            cost_estimate=cost,
        )(xp, *weights)

    try:
        out = run(True)        # single-buffer the VMEM-resident weights
    except Exception:
        out = run(False)       # older Pallas: fall back to default double-buffering

    mu = out[:batch, :output_dim]
    sigma = out[:batch, oph:oph + output_dim]
    return mu, sigma


# ----------------------------------------------------------------------------- reference & init
def init_params(key, input_dim, width, depth, output_dim):
    """Deterministic synthetic parameters matching the PyTorch module's shapes."""
    nb = depth - 1
    ks = jax.random.split(key, 8)

    def linear(k, fan_in, fan_out, batch_shape=()):
        bound = 1.0 / jnp.sqrt(jnp.float32(fan_in))
        kw, kb = jax.random.split(k)
        w = jax.random.uniform(kw, batch_shape + (fan_in, fan_out), jnp.float32, -bound, bound)
        b = jax.random.uniform(kb, batch_shape + (fan_out,), jnp.float32, -bound, bound)
        return w, b

    def bn(k, shape):
        kg, kb, km, kv = jax.random.split(k, 4)
        gamma = jax.random.uniform(kg, shape, jnp.float32, 0.5, 1.5)
        beta = jax.random.uniform(kb, shape, jnp.float32, -0.5, 0.5)
        mean = jax.random.uniform(km, shape, jnp.float32, -0.5, 0.5)
        var = jax.random.uniform(kv, shape, jnp.float32, 0.5, 1.5)
        return gamma, beta, mean, var

    w1, b1 = linear(ks[0], input_dim, width)
    g1, be1, m1, v1 = bn(ks[1], (1, width))
    wb, bb = linear(ks[2], width, width, batch_shape=(nb,))
    gb, beb, mb, vb = bn(ks[3], (nb, width))
    wf, bf = linear(ks[4], width, 2 * output_dim)

    return dict(w1=w1, b1=b1.reshape(1, width), g1=g1, be1=be1, m1=m1, v1=v1,
                wb=wb, bb=bb, gb=gb, beb=beb, mb=mb, vb=vb,
                wf=wf, bf=bf.reshape(1, 2 * output_dim))


def reference_forward(x, params, *, input_dim, output_dim, flatten_image, matmul_dtype=None):
    """Pure-JAX reference mirroring the PyTorch forward (eval-mode BN).
    matmul_dtype=bf16 mirrors the kernel's MXU operand casting; None = full f32."""
    if flatten_image:
        x = x.reshape(-1, input_dim)
    x = x.astype(jnp.float32)

    def mm(a, w):
        if matmul_dtype is None:
            return jnp.dot(a, w, preferred_element_type=jnp.float32)
        return jnp.dot(a.astype(matmul_dtype), w.astype(matmul_dtype),
                       preferred_element_type=jnp.float32)

    h = mm(x, params["w1"]) + params["b1"]
    h = jnp.maximum(h, 0.0)
    h = (h - params["m1"]) / jnp.sqrt(params["v1"] + BN_EPS) * params["g1"] + params["be1"]
    for i in range(params["wb"].shape[0]):
        hi = mm(h, params["wb"][i]) + params["bb"][i]
        hi = jnp.maximum(hi, 0.0)
        hi = (hi - params["mb"][i]) / jnp.sqrt(params["vb"][i] + BN_EPS) * params["gb"][i] \
            + params["beb"][i]
        h = h + hi
    out = mm(h, params["wf"]) + params["bf"]
    return out[:, :output_dim], jax.nn.softplus(out[:, output_dim:])


# ----------------------------------------------------------------------------- main
if __name__ == "__main__":
    key = jax.random.PRNGKey(0)

    def run_case(case_key, *, x_shape, input_dim, width, depth, output_dim, flatten_image):
        kx, kp = jax.random.split(case_key)
        x = jax.random.normal(kx, x_shape, jnp.float32)
        params = init_params(kp, input_dim, width, depth, output_dim)
        prep = prepare_params(params)

        mu, sigma = mlp_skip_gauss_forward(x, prep, flatten_image=flatten_image)
        jax.block_until_ready((mu, sigma))

        batch = x.shape[0] if not flatten_image else int(jnp.size(x)) // input_dim
        assert mu.shape == (batch, output_dim) and sigma.shape == (batch, output_dim)

        # Tight check vs a reference that mirrors the kernel's bf16 MXU operands.
        mu_b, sg_b = reference_forward(x, params, input_dim=input_dim, output_dim=output_dim,
                                       flatten_image=flatten_image, matmul_dtype=_MATMUL_DTYPE)
        assert jnp.allclose(mu, mu_b, rtol=2e-2, atol=2e-2)
        assert jnp.allclose(sigma, sg_b, rtol=2e-2, atol=2e-2)

        # Looser sanity check vs the full-f32 PyTorch-equivalent forward.
        mu_f, sg_f = reference_forward(x, params, input_dim=input_dim, output_dim=output_dim,
                                       flatten_image=flatten_image, matmul_dtype=None)
        assert jnp.allclose(mu, mu_f, rtol=8e-2, atol=8e-2)
        assert jnp.allclose(sigma, sg_f, rtol=8e-2, atol=8e-2)
        assert bool(jnp.all(sigma > 0.0))

    # Case 1: flatten_image=True, image (20,1,4,4) -> input_dim=16; static-unrolled blocks,
    # ragged batch padding, multi-step batch grid.
    run_case(jax.random.fold_in(key, 0), x_shape=(20, 1, 4, 4),
             input_dim=16, width=32, depth=3, output_dim=4, flatten_image=True)

    # Case 2: deeper net (depth=10 -> lax.fori_loop residual path), flat inputs.
    run_case(jax.random.fold_in(key, 1), x_shape=(64, 40),
             input_dim=40, width=64, depth=10, output_dim=3, flatten_image=False)

    print("KERNEL_OK")
</pallas_src>

<mosaic_0001>
module attributes {stable_mosaic.version = 11 : i64} {
  func.func @_mlp_skip_gauss_kernel(%arg0: i32, %arg1: memref<16x16xf32, #tpu.memory_space<vmem>>, %arg2: memref<16x128xbf16, #tpu.memory_space<vmem>>, %arg3: memref<1x128xf32, #tpu.memory_space<vmem>>, %arg4: memref<1x128xf32, #tpu.memory_space<vmem>>, %arg5: memref<1x128xf32, #tpu.memory_space<vmem>>, %arg6: memref<2x128x128xbf16, #tpu.memory_space<vmem>>, %arg7: memref<2x1x128xf32, #tpu.memory_space<vmem>>, %arg8: memref<2x1x128xf32, #tpu.memory_space<vmem>>, %arg9: memref<2x1x128xf32, #tpu.memory_space<vmem>>, %arg10: memref<128x256xbf16, #tpu.memory_space<vmem>>, %arg11: memref<1x256xf32, #tpu.memory_space<vmem>>, %arg12: memref<16x256xf32, #tpu.memory_space<vmem>>) attributes {dimension_semantics = [#tpu.dimension_semantics<parallel>], iteration_bounds = array<i64: 2>, scalar_prefetch = 0 : i64, scratch_operands = 0 : i64, tpu.core_type = #tpu.core_type<tc>, window_params = [{transform_indices = @transform_0, window_bounds = array<i64: 16, 16>}, {pipeline_mode = #tpu.pipeline_mode<synchronous>, transform_indices = @transform_1, window_bounds = array<i64: 16, 128>}, {pipeline_mode = #tpu.pipeline_mode<synchronous>, transform_indices = @transform_2, window_bounds = array<i64: 1, 128>}, {pipeline_mode = #tpu.pipeline_mode<synchronous>, transform_indices = @transform_3, window_bounds = array<i64: 1, 128>}, {pipeline_mode = #tpu.pipeline_mode<synchronous>, transform_indices = @transform_4, window_bounds = array<i64: 1, 128>}, {pipeline_mode = #tpu.pipeline_mode<synchronous>, transform_indices = @transform_5, window_bounds = array<i64: 2, 128, 128>}, {pipeline_mode = #tpu.pipeline_mode<synchronous>, transform_indices = @transform_6, window_bounds = array<i64: 2, 1, 128>}, {pipeline_mode = #tpu.pipeline_mode<synchronous>, transform_indices = @transform_7, window_bounds = array<i64: 2, 1, 128>}, {pipeline_mode = #tpu.pipeline_mode<synchronous>, transform_indices = @transform_8, window_bounds = array<i64: 2, 1, 128>}, {pipeline_mode = #tpu.pipeline_mode<synchronous>, transform_indices = @transform_9, window_bounds = array<i64: 128, 256>}, {pipeline_mode = #tpu.pipeline_mode<synchronous>, transform_indices = @transform_10, window_bounds = array<i64: 1, 256>}, {transform_indices = @transform_11, window_bounds = array<i64: 16, 256>}]} {
    %c0 = arith.constant 0 : index
    %c0_0 = arith.constant 0 : index
    %0 = vector.load %arg1[%c0, %c0_0] : memref<16x16xf32, #tpu.memory_space<vmem>>, vector<16x16xf32>
    %1 = arith.truncf %0 : vector<16x16xf32> to vector<16x16xbf16>
    %c0_1 = arith.constant 0 : index
    %c0_2 = arith.constant 0 : index
    %2 = vector.load %arg2[%c0_1, %c0_2] : memref<16x128xbf16, #tpu.memory_space<vmem>>, vector<16x128xbf16>
    %cst = arith.constant dense<0.000000e+00> : vector<16x128xf32>
    %3 = tpu.matmul %1, %2, %cst {dimension_numbers = #tpu.dot_dimension_numbers<[1], [0], [0], [1], [0, 0, 1, 1], [], []>} : vector<16x16xbf16>, vector<16x128xbf16>, vector<16x128xf32> -> vector<16x128xf32>
    %c0_3 = arith.constant 0 : index
    %c0_4 = arith.constant 0 : index
    %4 = vector.load %arg3[%c0_3, %c0_4] : memref<1x128xf32, #tpu.memory_space<vmem>>, vector<1x128xf32>
    %5 = vector.broadcast %4 : vector<1x128xf32> to vector<16x128xf32>
    %6 = arith.addf %3, %5 : vector<16x128xf32>
    %cst_5 = arith.constant 0.000000e+00 : f32
    %7 = vector.broadcast %cst_5 : f32 to vector<16x128xf32>
    %8 = arith.maximumf %6, %7 : vector<16x128xf32>
    %c0_6 = arith.constant 0 : index
    %c0_7 = arith.constant 0 : index
    %9 = vector.load %arg4[%c0_6, %c0_7] : memref<1x128xf32, #tpu.memory_space<vmem>>, vector<1x128xf32>
    %10 = vector.broadcast %9 : vector<1x128xf32> to vector<16x128xf32>
    %11 = arith.mulf %8, %10 : vector<16x128xf32>
    %c0_8 = arith.constant 0 : index
    %c0_9 = arith.constant 0 : index
    %12 = vector.load %arg5[%c0_8, %c0_9] : memref<1x128xf32, #tpu.memory_space<vmem>>, vector<1x128xf32>
    %13 = vector.broadcast %12 : vector<1x128xf32> to vector<16x128xf32>
    %14 = arith.addf %11, %13 : vector<16x128xf32>
    %15 = arith.truncf %14 : vector<16x128xf32> to vector<16x128xbf16>
    %c0_10 = arith.constant 0 : index
    %c0_11 = arith.constant 0 : index
    %c0_12 = arith.constant 0 : index
    %16 = vector.load %arg6[%c0_10, %c0_11, %c0_12] : memref<2x128x128xbf16, #tpu.memory_space<vmem>>, vector<1x128x128xbf16>
    %17 = vector.shape_cast %16 : vector<1x128x128xbf16> to vector<128x128xbf16>
    %cst_13 = arith.constant dense<0.000000e+00> : vector<16x128xf32>
    %18 = tpu.matmul %15, %17, %cst_13 {dimension_numbers = #tpu.dot_dimension_numbers<[1], [0], [0], [1], [0, 0, 1, 1], [], []>} : vector<16x128xbf16>, vector<128x128xbf16>, vector<16x128xf32> -> vector<16x128xf32>
    %c0_14 = arith.constant 0 : index
    %c0_15 = arith.constant 0 : index
    %c0_16 = arith.constant 0 : index
    %19 = vector.load %arg7[%c0_14, %c0_15, %c0_16] : memref<2x1x128xf32, #tpu.memory_space<vmem>>, vector<1x1x128xf32>
    %20 = vector.shape_cast %19 : vector<1x1x128xf32> to vector<1x128xf32>
    %21 = vector.broadcast %20 : vector<1x128xf32> to vector<16x128xf32>
    %22 = arith.addf %18, %21 : vector<16x128xf32>
    %cst_17 = arith.constant 0.000000e+00 : f32
    %23 = vector.broadcast %cst_17 : f32 to vector<16x128xf32>
    %24 = arith.maximumf %22, %23 : vector<16x128xf32>
    %c0_18 = arith.constant 0 : index
    %c0_19 = arith.constant 0 : index
    %c0_20 = arith.constant 0 : index
    %25 = vector.load %arg8[%c0_18, %c0_19, %c0_20] : memref<2x1x128xf32, #tpu.memory_space<vmem>>, vector<1x1x128xf32>
    %26 = vector.shape_cast %25 : vector<1x1x128xf32> to vector<1x128xf32>
    %27 = vector.broadcast %26 : vector<1x128xf32> to vector<16x128xf32>
    %28 = arith.mulf %24, %27 : vector<16x128xf32>
    %29 = arith.addf %14, %28 : vector<16x128xf32>
    %c0_21 = arith.constant 0 : index
    %c0_22 = arith.constant 0 : index
    %c0_23 = arith.constant 0 : index
    %30 = vector.load %arg9[%c0_21, %c0_22, %c0_23] : memref<2x1x128xf32, #tpu.memory_space<vmem>>, vector<1x1x128xf32>
    %31 = vector.shape_cast %30 : vector<1x1x128xf32> to vector<1x128xf32>
    %32 = vector.broadcast %31 : vector<1x128xf32> to vector<16x128xf32>
    %33 = arith.addf %29, %32 : vector<16x128xf32>
    %34 = arith.truncf %33 : vector<16x128xf32> to vector<16x128xbf16>
    %c1 = arith.constant 1 : index
    %c0_24 = arith.constant 0 : index
    %c0_25 = arith.constant 0 : index
    %35 = vector.load %arg6[%c1, %c0_24, %c0_25] : memref<2x128x128xbf16, #tpu.memory_space<vmem>>, vector<1x128x128xbf16>
    %36 = vector.shape_cast %35 : vector<1x128x128xbf16> to vector<128x128xbf16>
    %cst_26 = arith.constant dense<0.000000e+00> : vector<16x128xf32>
    %37 = tpu.matmul %34, %36, %cst_26 {dimension_numbers = #tpu.dot_dimension_numbers<[1], [0], [0], [1], [0, 0, 1, 1], [], []>} : vector<16x128xbf16>, vector<128x128xbf16>, vector<16x128xf32> -> vector<16x128xf32>
    %c1_27 = arith.constant 1 : index
    %c0_28 = arith.constant 0 : index
    %c0_29 = arith.constant 0 : index
    %38 = vector.load %arg7[%c1_27, %c0_28, %c0_29] : memref<2x1x128xf32, #tpu.memory_space<vmem>>, vector<1x1x128xf32>
    %39 = vector.shape_cast %38 : vector<1x1x128xf32> to vector<1x128xf32>
    %40 = vector.broadcast %39 : vector<1x128xf32> to vector<16x128xf32>
    %41 = arith.addf %37, %40 : vector<16x128xf32>
    %cst_30 = arith.constant 0.000000e+00 : f32
    %42 = vector.broadcast %cst_30 : f32 to vector<16x128xf32>
    %43 = arith.maximumf %41, %42 : vector<16x128xf32>
    %c1_31 = arith.constant 1 : index
    %c0_32 = arith.constant 0 : index
    %c0_33 = arith.constant 0 : index
    %44 = vector.load %arg8[%c1_31, %c0_32, %c0_33] : memref<2x1x128xf32, #tpu.memory_space<vmem>>, vector<1x1x128xf32>
    %45 = vector.shape_cast %44 : vector<1x1x128xf32> to vector<1x128xf32>
    %46 = vector.broadcast %45 : vector<1x128xf32> to vector<16x128xf32>
    %47 = arith.mulf %43, %46 : vector<16x128xf32>
    %48 = arith.addf %33, %47 : vector<16x128xf32>
    %c1_34 = arith.constant 1 : index
    %c0_35 = arith.constant 0 : index
    %c0_36 = arith.constant 0 : index
    %49 = vector.load %arg9[%c1_34, %c0_35, %c0_36] : memref<2x1x128xf32, #tpu.memory_space<vmem>>, vector<1x1x128xf32>
    %50 = vector.shape_cast %49 : vector<1x1x128xf32> to vector<1x128xf32>
    %51 = vector.broadcast %50 : vector<1x128xf32> to vector<16x128xf32>
    %52 = arith.addf %48, %51 : vector<16x128xf32>
    %53 = arith.truncf %52 : vector<16x128xf32> to vector<16x128xbf16>
    %c0_37 = arith.constant 0 : index
    %c0_38 = arith.constant 0 : index
    %54 = vector.load %arg10[%c0_37, %c0_38] : memref<128x256xbf16, #tpu.memory_space<vmem>>, vector<128x256xbf16>
    %cst_39 = arith.constant dense<0.000000e+00> : vector<16x256xf32>
    %55 = tpu.matmul %53, %54, %cst_39 {dimension_numbers = #tpu.dot_dimension_numbers<[1], [0], [0], [1], [0, 0, 1, 1], [], []>} : vector<16x128xbf16>, vector<128x256xbf16>, vector<16x256xf32> -> vector<16x256xf32>
    %c0_40 = arith.constant 0 : index
    %c0_41 = arith.constant 0 : index
    %56 = vector.load %arg11[%c0_40, %c0_41] : memref<1x256xf32, #tpu.memory_space<vmem>>, vector<1x256xf32>
    %57 = vector.broadcast %56 : vector<1x256xf32> to vector<16x256xf32>
    %58 = arith.addf %55, %57 : vector<16x256xf32>
    %59 = vector.extract_strided_slice %58 {offsets = [0, 0], sizes = [16, 128], strides = [1, 1]} : vector<16x256xf32> to vector<16x128xf32>
    %c0_42 = arith.constant 0 : index
    %c0_43 = arith.constant 0 : index
    %60 = vector.load %arg12[%c0_42, %c0_43] : memref<16x256xf32, #tpu.memory_space<vmem>>, vector<16x128xf32>
    tpu.vector_store %arg12[%c0_42, %c0_43], %59 {strides = array<i32>} : memref<16x256xf32, #tpu.memory_space<vmem>>, vector<16x128xf32>,
    %61 = vector.extract_strided_slice %58 {offsets = [0, 128], sizes = [16, 128], strides = [1, 1]} : vector<16x256xf32> to vector<16x128xf32>
    %cst_44 = arith.constant 0.000000e+00 : f32
    %62 = vector.broadcast %cst_44 : f32 to vector<16x128xf32>
    %63 = arith.maximumf %61, %62 : vector<16x128xf32>
    %64 = vector.broadcast %cst_44 : f32 to vector<16x128xf32>
    %65 = arith.subf %61, %64 : vector<16x128xf32>
    %66 = arith.cmpf one, %65, %65 : vector<16x128xf32>
    %67 = vector.broadcast %cst_44 : f32 to vector<16x128xf32>
    %68 = arith.addf %61, %67 : vector<16x128xf32>
    %69 = math.absf %65 : vector<16x128xf32>
    %cst_45 = arith.constant 0.000000e+00 : f32
    %70 = vector.broadcast %cst_45 : f32 to vector<16x128xf32>
    %71 = arith.subf %70, %69 : vector<16x128xf32>
    %72 = math.exp %71 : vector<16x128xf32>
    %73 = math.log1p %72 : vector<16x128xf32>
    %74 = arith.addf %63, %73 : vector<16x128xf32>
    %75 = arith.select %66, %68, %74 : vector<16x128xi1>, vector<16x128xf32>
    %c0_46 = arith.constant 0 : index
    %c128 = arith.constant 128 : index
    %76 = vector.load %arg12[%c0_46, %c128] : memref<16x256xf32, #tpu.memory_space<vmem>>, vector<16x128xf32>
    tpu.vector_store %arg12[%c0_46, %c128], %75 {strides = array<i32>} : memref<16x256xf32, #tpu.memory_space<vmem>>, vector<16x128xf32>,
    return
  }
  func.func @transform_0(%arg0: i32) -> (i32, i32) {
    %c0_i32 = arith.constant 0 : i32
    %c0_i32_0 = arith.constant 0 : i32
    return %arg0, %c0_i32 : i32, i32
  }
  func.func @transform_1(%arg0: i32) -> (i32, i32) {
    %c0_i32 = arith.constant 0 : i32
    %c0_i32_0 = arith.constant 0 : i32
    %c0_i32_1 = arith.constant 0 : i32
    return %c0_i32, %c0_i32_0 : i32, i32
  }
  func.func @transform_2(%arg0: i32) -> (i32, i32) {
    %c0_i32 = arith.constant 0 : i32
    %c0_i32_0 = arith.constant 0 : i32
    %c0_i32_1 = arith.constant 0 : i32
    return %c0_i32, %c0_i32_0 : i32, i32
  }
  func.func @transform_3(%arg0: i32) -> (i32, i32) {
    %c0_i32 = arith.constant 0 : i32
    %c0_i32_0 = arith.constant 0 : i32
    %c0_i32_1 = arith.constant 0 : i32
    return %c0_i32, %c0_i32_0 : i32, i32
  }
  func.func @transform_4(%arg0: i32) -> (i32, i32) {
    %c0_i32 = arith.constant 0 : i32
    %c0_i32_0 = arith.constant 0 : i32
    %c0_i32_1 = arith.constant 0 : i32
    return %c0_i32, %c0_i32_0 : i32, i32
  }
  func.func @transform_5(%arg0: i32) -> (i32, i32, i32) {
    %c0_i32 = arith.constant 0 : i32
    %c0_i32_0 = arith.constant 0 : i32
    %c0_i32_1 = arith.constant 0 : i32
    %c0_i32_2 = arith.constant 0 : i32
    return %c0_i32, %c0_i32_0, %c0_i32_1 : i32, i32, i32
  }
  func.func @transform_6(%arg0: i32) -> (i32, i32, i32) {
    %c0_i32 = arith.constant 0 : i32
    %c0_i32_0 = arith.constant 0 : i32
    %c0_i32_1 = arith.constant 0 : i32
    %c0_i32_2 = arith.constant 0 : i32
    return %c0_i32, %c0_i32_0, %c0_i32_1 : i32, i32, i32
  }
  func.func @transform_7(%arg0: i32) -> (i32, i32, i32) {
    %c0_i32 = arith.constant 0 : i32
    %c0_i32_0 = arith.constant 0 : i32
    %c0_i32_1 = arith.constant 0 : i32
    %c0_i32_2 = arith.constant 0 : i32
    return %c0_i32, %c0_i32_0, %c0_i32_1 : i32, i32, i32
  }
  func.func @transform_8(%arg0: i32) -> (i32, i32, i32) {
    %c0_i32 = arith.constant 0 : i32
    %c0_i32_0 = arith.constant 0 : i32
    %c0_i32_1 = arith.constant 0 : i32
    %c0_i32_2 = arith.constant 0 : i32
    return %c0_i32, %c0_i32_0, %c0_i32_1 : i32, i32, i32
  }
  func.func @transform_9(%arg0: i32) -> (i32, i32) {
    %c0_i32 = arith.constant 0 : i32
    %c0_i32_0 = arith.constant 0 : i32
    %c0_i32_1 = arith.constant 0 : i32
    return %c0_i32, %c0_i32_0 : i32, i32
  }
  func.func @transform_10(%arg0: i32) -> (i32, i32) {
    %c0_i32 = arith.constant 0 : i32
    %c0_i32_0 = arith.constant 0 : i32
    %c0_i32_1 = arith.constant 0 : i32
    return %c0_i32, %c0_i32_0 : i32, i32
  }
  func.func @transform_11(%arg0: i32) -> (i32, i32) {
    %c0_i32 = arith.constant 0 : i32
    %c0_i32_0 = arith.constant 0 : i32
    return %arg0, %c0_i32 : i32, i32
  }
}

module attributes {stable_mosaic.version = 11 : i64} {
  func.func @_mlp_skip_gauss_kernel(%arg0: i32, %arg1: memref<16x16xf32, #tpu.memory_space<vmem>>, %arg2: memref<16x128xbf16, #tpu.memory_space<vmem>>, %arg3: memref<1x128xf32, #tpu.memory_space<vmem>>, %arg4: memref<1x128xf32, #tpu.memory_space<vmem>>, %arg5: memref<1x128xf32, #tpu.memory_space<vmem>>, %arg6: memref<2x128x128xbf16, #tpu.memory_space<vmem>>, %arg7: memref<2x1x128xf32, #tpu.memory_space<vmem>>, %arg8: memref<2x1x128xf32, #tpu.memory_space<vmem>>, %arg9: memref<2x1x128xf32, #tpu.memory_space<vmem>>, %arg10: memref<128x256xbf16, #tpu.memory_space<vmem>>, %arg11: memref<1x256xf32, #tpu.memory_space<vmem>>, %arg12: memref<16x256xf32, #tpu.memory_space<vmem>>) attributes {dimension_semantics = [#tpu.dimension_semantics<parallel>], iteration_bounds = array<i64: 2>, scalar_prefetch = 0 : i64, scratch_operands = 0 : i64, tpu.core_type = #tpu.core_type<tc>, window_params = [{transform_indices = @transform_0, window_bounds = array<i64: 16, 16>}, {pipeline_mode = #tpu.pipeline_mode<synchronous>, transform_indices = @transform_1, window_bounds = array<i64: 16, 128>}, {pipeline_mode = #tpu.pipeline_mode<synchronous>, transform_indices = @transform_2, window_bounds = array<i64: 1, 128>}, {pipeline_mode = #tpu.pipeline_mode<synchronous>, transform_indices = @transform_3, window_bounds = array<i64: 1, 128>}, {pipeline_mode = #tpu.pipeline_mode<synchronous>, transform_indices = @transform_4, window_bounds = array<i64: 1, 128>}, {pipeline_mode = #tpu.pipeline_mode<synchronous>, transform_indices = @transform_5, window_bounds = array<i64: 2, 128, 128>}, {pipeline_mode = #tpu.pipeline_mode<synchronous>, transform_indices = @transform_6, window_bounds = array<i64: 2, 1, 128>}, {pipeline_mode = #tpu.pipeline_mode<synchronous>, transform_indices = @transform_7, window_bounds = array<i64: 2, 1, 128>}, {pipeline_mode = #tpu.pipeline_mode<synchronous>, transform_indices = @transform_8, window_bounds = array<i64: 2, 1, 128>}, {pipeline_mode = #tpu.pipeline_mode<synchronous>, transform_indices = @transform_9, window_bounds = array<i64: 128, 256>}, {pipeline_mode = #tpu.pipeline_mode<synchronous>, transform_indices = @transform_10, window_bounds = array<i64: 1, 256>}, {transform_indices = @transform_11, window_bounds = array<i64: 16, 256>}]} {
    %c0 = arith.constant 0 : index
    %c0_0 = arith.constant 0 : index
    %0 = vector.load %arg1[%c0, %c0_0] : memref<16x16xf32, #tpu.memory_space<vmem>>, vector<16x16xf32>
    %1 = arith.truncf %0 : vector<16x16xf32> to vector<16x16xbf16>
    %c0_1 = arith.constant 0 : index
    %c0_2 = arith.constant 0 : index
    %2 = vector.load %arg2[%c0_1, %c0_2] : memref<16x128xbf16, #tpu.memory_space<vmem>>, vector<16x128xbf16>
    %cst = arith.constant dense<0.000000e+00> : vector<16x128xf32>
    %3 = tpu.matmul %1, %2, %cst {dimension_numbers = #tpu.dot_dimension_numbers<[1], [0], [0], [1], [0, 0, 1, 1], [], []>} : vector<16x16xbf16>, vector<16x128xbf16>, vector<16x128xf32> -> vector<16x128xf32>
    %c0_3 = arith.constant 0 : index
    %c0_4 = arith.constant 0 : index
    %4 = vector.load %arg3[%c0_3, %c0_4] : memref<1x128xf32, #tpu.memory_space<vmem>>, vector<1x128xf32>
    %5 = vector.broadcast %4 : vector<1x128xf32> to vector<16x128xf32>
    %6 = arith.addf %3, %5 : vector<16x128xf32>
    %cst_5 = arith.constant 0.000000e+00 : f32
    %7 = vector.broadcast %cst_5 : f32 to vector<16x128xf32>
    %8 = arith.maximumf %6, %7 : vector<16x128xf32>
    %c0_6 = arith.constant 0 : index
    %c0_7 = arith.constant 0 : index
    %9 = vector.load %arg4[%c0_6, %c0_7] : memref<1x128xf32, #tpu.memory_space<vmem>>, vector<1x128xf32>
    %10 = vector.broadcast %9 : vector<1x128xf32> to vector<16x128xf32>
    %11 = arith.mulf %8, %10 : vector<16x128xf32>
    %c0_8 = arith.constant 0 : index
    %c0_9 = arith.constant 0 : index
    %12 = vector.load %arg5[%c0_8, %c0_9] : memref<1x128xf32, #tpu.memory_space<vmem>>, vector<1x128xf32>
    %13 = vector.broadcast %12 : vector<1x128xf32> to vector<16x128xf32>
    %14 = arith.addf %11, %13 : vector<16x128xf32>
    %15 = arith.truncf %14 : vector<16x128xf32> to vector<16x128xbf16>
    %c0_10 = arith.constant 0 : index
    %c0_11 = arith.constant 0 : index
    %c0_12 = arith.constant 0 : index
    %16 = vector.load %arg6[%c0_10, %c0_11, %c0_12] : memref<2x128x128xbf16, #tpu.memory_space<vmem>>, vector<1x128x128xbf16>
    %17 = vector.shape_cast %16 : vector<1x128x128xbf16> to vector<128x128xbf16>
    %cst_13 = arith.constant dense<0.000000e+00> : vector<16x128xf32>
    %18 = tpu.matmul %15, %17, %cst_13 {dimension_numbers = #tpu.dot_dimension_numbers<[1], [0], [0], [1], [0, 0, 1, 1], [], []>} : vector<16x128xbf16>, vector<128x128xbf16>, vector<16x128xf32> -> vector<16x128xf32>
    %c0_14 = arith.constant 0 : index
    %c0_15 = arith.constant 0 : index
    %c0_16 = arith.constant 0 : index
    %19 = vector.load %arg7[%c0_14, %c0_15, %c0_16] : memref<2x1x128xf32, #tpu.memory_space<vmem>>, vector<1x1x128xf32>
    %20 = vector.shape_cast %19 : vector<1x1x128xf32> to vector<1x128xf32>
    %21 = vector.broadcast %20 : vector<1x128xf32> to vector<16x128xf32>
    %22 = arith.addf %18, %21 : vector<16x128xf32>
    %cst_17 = arith.constant 0.000000e+00 : f32
    %23 = vector.broadcast %cst_17 : f32 to vector<16x128xf32>
    %24 = arith.maximumf %22, %23 : vector<16x128xf32>
    %c0_18 = arith.constant 0 : index
    %c0_19 = arith.constant 0 : index
    %c0_20 = arith.constant 0 : index
    %25 = vector.load %arg8[%c0_18, %c0_19, %c0_20] : memref<2x1x128xf32, #tpu.memory_space<vmem>>, vector<1x1x128xf32>
    %26 = vector.shape_cast %25 : vector<1x1x128xf32> to vector<1x128xf32>
    %27 = vector.broadcast %26 : vector<1x128xf32> to vector<16x128xf32>
    %28 = arith.mulf %24, %27 : vector<16x128xf32>
    %29 = arith.addf %14, %28 : vector<16x128xf32>
    %c0_21 = arith.constant 0 : index
    %c0_22 = arith.constant 0 : index
    %c0_23 = arith.constant 0 : index
    %30 = vector.load %arg9[%c0_21, %c0_22, %c0_23] : memref<2x1x128xf32, #tpu.memory_space<vmem>>, vector<1x1x128xf32>
    %31 = vector.shape_cast %30 : vector<1x1x128xf32> to vector<1x128xf32>
    %32 = vector.broadcast %31 : vector<1x128xf32> to vector<16x128xf32>
    %33 = arith.addf %29, %32 : vector<16x128xf32>
    %34 = arith.truncf %33 : vector<16x128xf32> to vector<16x128xbf16>
    %c1 = arith.constant 1 : index
    %c0_24 = arith.constant 0 : index
    %c0_25 = arith.constant 0 : index
    %35 = vector.load %arg6[%c1, %c0_24, %c0_25] : memref<2x128x128xbf16, #tpu.memory_space<vmem>>, vector<1x128x128xbf16>
    %36 = vector.shape_cast %35 : vector<1x128x128xbf16> to vector<128x128xbf16>
    %cst_26 = arith.constant dense<0.000000e+00> : vector<16x128xf32>
    %37 = tpu.matmul %34, %36, %cst_26 {dimension_numbers = #tpu.dot_dimension_numbers<[1], [0], [0], [1], [0, 0, 1, 1], [], []>} : vector<16x128xbf16>, vector<128x128xbf16>, vector<16x128xf32> -> vector<16x128xf32>
    %c1_27 = arith.constant 1 : index
    %c0_28 = arith.constant 0 : index
    %c0_29 = arith.constant 0 : index
    %38 = vector.load %arg7[%c1_27, %c0_28, %c0_29] : memref<2x1x128xf32, #tpu.memory_space<vmem>>, vector<1x1x128xf32>
    %39 = vector.shape_cast %38 : vector<1x1x128xf32> to vector<1x128xf32>
    %40 = vector.broadcast %39 : vector<1x128xf32> to vector<16x128xf32>
    %41 = arith.addf %37, %40 : vector<16x128xf32>
    %cst_30 = arith.constant 0.000000e+00 : f32
    %42 = vector.broadcast %cst_30 : f32 to vector<16x128xf32>
    %43 = arith.maximumf %41, %42 : vector<16x128xf32>
    %c1_31 = arith.constant 1 : index
    %c0_32 = arith.constant 0 : index
    %c0_33 = arith.constant 0 : index
    %44 = vector.load %arg8[%c1_31, %c0_32, %c0_33] : memref<2x1x128xf32, #tpu.memory_space<vmem>>, vector<1x1x128xf32>
    %45 = vector.shape_cast %44 : vector<1x1x128xf32> to vector<1x128xf32>
    %46 = vector.broadcast %45 : vector<1x128xf32> to vector<16x128xf32>
    %47 = arith.mulf %43, %46 : vector<16x128xf32>
    %48 = arith.addf %33, %47 : vector<16x128xf32>
    %c1_34 = arith.constant 1 : index
    %c0_35 = arith.constant 0 : index
    %c0_36 = arith.constant 0 : index
    %49 = vector.load %arg9[%c1_34, %c0_35, %c0_36] : memref<2x1x128xf32, #tpu.memory_space<vmem>>, vector<1x1x128xf32>
    %50 = vector.shape_cast %49 : vector<1x1x128xf32> to vector<1x128xf32>
    %51 = vector.broadcast %50 : vector<1x128xf32> to vector<16x128xf32>
    %52 = arith.addf %48, %51 : vector<16x128xf32>
    %53 = arith.truncf %52 : vector<16x128xf32> to vector<16x128xbf16>
    %c0_37 = arith.constant 0 : index
    %c0_38 = arith.constant 0 : index
    %54 = vector.load %arg10[%c0_37, %c0_38] : memref<128x256xbf16, #tpu.memory_space<vmem>>, vector<128x256xbf16>
    %cst_39 = arith.constant dense<0.000000e+00> : vector<16x256xf32>
    %55 = tpu.matmul %53, %54, %cst_39 {dimension_numbers = #tpu.dot_dimension_numbers<[1], [0], [0], [1], [0, 0, 1, 1], [], []>} : vector<16x128xbf16>, vector<128x256xbf16>, vector<16x256xf32> -> vector<16x256xf32>
    %c0_40 = arith.constant 0 : index
    %c0_41 = arith.constant 0 : index
    %56 = vector.load %arg11[%c0_40, %c0_41] : memref<1x256xf32, #tpu.memory_space<vmem>>, vector<1x256xf32>
    %57 = vector.broadcast %56 : vector<1x256xf32> to vector<16x256xf32>
    %58 = arith.addf %55, %57 : vector<16x256xf32>
    %59 = vector.extract_strided_slice %58 {offsets = [0, 0], sizes = [16, 128], strides = [1, 1]} : vector<16x256xf32> to vector<16x128xf32>
    %c0_42 = arith.constant 0 : index
    %c0_43 = arith.constant 0 : index
    %60 = vector.load %arg12[%c0_42, %c0_43] : memref<16x256xf32, #tpu.memory_space<vmem>>, vector<16x128xf32>
    tpu.vector_store %arg12[%c0_42, %c0_43], %59 {strides = array<i32>} : memref<16x256xf32, #tpu.memory_space<vmem>>, vector<16x128xf32>,
    %61 = vector.extract_strided_slice %58 {offsets = [0, 128], sizes = [16, 128], strides = [1, 1]} : vector<16x256xf32> to vector<16x128xf32>
    %cst_44 = arith.constant 0.000000e+00 : f32
    %62 = vector.broadcast %cst_44 : f32 to vector<16x128xf32>
    %63 = arith.maximumf %61, %62 : vector<16x128xf32>
    %64 = vector.broadcast %cst_44 : f32 to vector<16x128xf32>
    %65 = arith.subf %61, %64 : vector<16x128xf32>
    %66 = arith.cmpf one, %65, %65 : vector<16x128xf32>
    %67 = vector.broadcast %cst_44 : f32 to vector<16x128xf32>
    %68 = arith.addf %61, %67 : vector<16x128xf32>
    %69 = math.absf %65 : vector<16x128xf32>
    %cst_45 = arith.constant 0.000000e+00 : f32
    %70 = vector.broadcast %cst_45 : f32 to vector<16x128xf32>
    %71 = arith.subf %70, %69 : vector<16x128xf32>
    %72 = math.exp %71 : vector<16x128xf32>
    %73 = math.log1p %72 : vector<16x128xf32>
    %74 = arith.addf %63, %73 : vector<16x128xf32>
    %75 = arith.select %66, %68, %74 : vector<16x128xi1>, vector<16x128xf32>
    %c0_46 = arith.constant 0 : index
    %c128 = arith.constant 128 : index
    %76 = vector.load %arg12[%c0_46, %c128] : memref<16x256xf32, #tpu.memory_space<vmem>>, vector<16x128xf32>
    tpu.vector_store %arg12[%c0_46, %c128], %75 {strides = array<i32>} : memref<16x256xf32, #tpu.memory_space<vmem>>, vector<16x128xf32>,
    return
  }
  func.func @transform_0(%arg0: i32) -> (i32, i32) {
    %c0_i32 = arith.constant 0 : i32
    %c0_i32_0 = arith.constant 0 : i32
    return %arg0, %c0_i32 : i32, i32
  }
  func.func @transform_1(%arg0: i32) -> (i32, i32) {
    %c0_i32 = arith.constant 0 : i32
    %c0_i32_0 = arith.constant 0 : i32
    %c0_i32_1 = arith.constant 0 : i32
    return %c0_i32, %c0_i32_0 : i32, i32
  }
  func.func @transform_2(%arg0: i32) -> (i32, i32) {
    %c0_i32 = arith.constant 0 : i32
    %c0_i32_0 = arith.constant 0 : i32
    %c0_i32_1 = arith.constant 0 : i32
    return %c0_i32, %c0_i32_0 : i32, i32
  }
  func.func @transform_3(%arg0: i32) -> (i32, i32) {
    %c0_i32 = arith.constant 0 : i32
    %c0_i32_0 = arith.constant 0 : i32
    %c0_i32_1 = arith.constant 0 : i32
    return %c0_i32, %c0_i32_0 : i32, i32
  }
  func.func @transform_4(%arg0: i32) -> (i32, i32) {
    %c0_i32 = arith.constant 0 : i32
    %c0_i32_0 = arith.constant 0 : i32
    %c0_i32_1 = arith.constant 0 : i32
    return %c0_i32, %c0_i32_0 : i32, i32
  }
  func.func @transform_5(%arg0: i32) -> (i32, i32, i32) {
    %c0_i32 = arith.constant 0 : i32
    %c0_i32_0 = arith.constant 0 : i32
    %c0_i32_1 = arith.constant 0 : i32
    %c0_i32_2 = arith.constant 0 : i32
    return %c0_i32, %c0_i32_0, %c0_i32_1 : i32, i32, i32
  }
  func.func @transform_6(%arg0: i32) -> (i32, i32, i32) {
    %c0_i32 = arith.constant 0 : i32
    %c0_i32_0 = arith.constant 0 : i32
    %c0_i32_1 = arith.constant 0 : i32
    %c0_i32_2 = arith.constant 0 : i32
    return %c0_i32, %c0_i32_0, %c0_i32_1 : i32, i32, i32
  }
  func.func @transform_7(%arg0: i32) -> (i32, i32, i32) {
    %c0_i32 = arith.constant 0 : i32
    %c0_i32_0 = arith.constant 0 : i32
    %c0_i32_1 = arith.constant 0 : i32
    %c0_i32_2 = arith.constant 0 : i32
    return %c0_i32, %c0_i32_0, %c0_i32_1 : i32, i32, i32
  }
  func.func @transform_8(%arg0: i32) -> (i32, i32, i32) {
    %c0_i32 = arith.constant 0 : i32
    %c0_i32_0 = arith.constant 0 : i32
    %c0_i32_1 = arith.constant 0 : i32
    %c0_i32_2 = arith.constant 0 : i32
    return %c0_i32, %c0_i32_0, %c0_i32_1 : i32, i32, i32
  }
  func.func @transform_9(%arg0: i32) -> (i32, i32) {
    %c0_i32 = arith.constant 0 : i32
    %c0_i32_0 = arith.constant 0 : i32
    %c0_i32_1 = arith.constant 0 : i32
    return %c0_i32, %c0_i32_0 : i32, i32
  }
  func.func @transform_10(%arg0: i32) -> (i32, i32) {
    %c0_i32 = arith.constant 0 : i32
    %c0_i32_0 = arith.constant 0 : i32
    %c0_i32_1 = arith.constant 0 : i32
    return %c0_i32, %c0_i32_0 : i32, i32
  }
  func.func @transform_11(%arg0: i32) -> (i32, i32) {
    %c0_i32 = arith.constant 0 : i32
    %c0_i32_0 = arith.constant 0 : i32
    return %arg0, %c0_i32 : i32, i32
  }
}

</mosaic_0001>

<llo_original>
// kernel: tpu_custom_call.1
$region0: #{tpu_custom_call.1}
  #allocation0 [shape = 'u32[]', space=smem, size = 0x4, offset = 0x4, fixed_abs, tag = 'smem constant byte address 0x4 - core index']
  #allocation1 [shape = 'u32[72,128]{1,0:T(1,128)}', space=vmem, size = 0x9000, scoped, tag = 'internal scratch']
  %s0 = inlined_call_operand.vmem [shape: f32[32,16], index: 0, kind: input, shape index: {}]
  %s1 = inlined_call_operand.vmem [shape: bf16[16,128], index: 1, kind: input, shape index: {}]
  %s2 = inlined_call_operand.vmem [shape: f32[1,128], index: 2, kind: input, shape index: {}]
  %s3 = inlined_call_operand.vmem [shape: f32[1,128], index: 3, kind: input, shape index: {}]
  %s4 = inlined_call_operand.vmem [shape: f32[1,128], index: 4, kind: input, shape index: {}]
  %s5 = inlined_call_operand.hbm [shape: bf16[2,128,128], index: 5, kind: input, shape index: {}]
  %s6 = inlined_call_operand.vmem [shape: f32[2,1,128], index: 6, kind: input, shape index: {}]
  %s7 = inlined_call_operand.vmem [shape: f32[2,1,128], index: 7, kind: input, shape index: {}]
  %s8 = inlined_call_operand.vmem [shape: f32[2,1,128], index: 8, kind: input, shape index: {}]
  %s9 = inlined_call_operand.hbm [shape: bf16[128,256], index: 9, kind: input, shape index: {}]
  %s10 = inlined_call_operand.vmem [shape: f32[1,256], index: 10, kind: input, shape index: {}]
  %s11 = inlined_call_operand.hbm [shape: f32[32,256], index: 11, kind: output, shape index: {}]
  %s12 = sld [smem:[#allocation0]]
  $region85: #{tpu_custom_call.1} parent=0
    _
  %s14 = ssub.s32 1, %s12
  %s15 = scalar_select 0, %s14, %s12
  $region1: #{tpu_custom_call.1} parent=0
    #allocation2 [shape = 'u8[65536]{0}', space=vmem, size = 0x10000, scoped, tag = 'input window, operand 5, single buffered']
    #allocation3 [shape = 's32[2]{0}', space=sflag, size = 0x8, scoped, tag = 'scoped memory for tpu_custom_call.1']
    #allocation4 [shape = 's32[2]{0}', space=sflag, size = 0x8, scoped, tag = 'scoped memory for tpu_custom_call.1']
    #allocation5 [shape = 'u8[65536]{0}', space=vmem, size = 0x10000, scoped, tag = 'input window, operand 9, single buffered']
    #allocation6 [shape = 's32[1]{0}', space=sflag, size = 0x4, scoped, tag = 'scoped memory for tpu_custom_call.1']
    #allocation7 [shape = 'u8[32768]{0}', space=vmem, size = 0x8000, scoped, tag = 'output window, operand 0']
    %16 = vsyncpa [#allocation3], 0
    %17 = vsyncpa [#allocation6], 0
    %18 = vsyncpa [#allocation4], 0
    %s19 = scalar_lea.sflag [#allocation4], 1
    %20 = vsyncpa %s19, 0
    loop: start=0, step=1, limit=4
    $region2: #{tpu_custom_call.1} parent=1 // loop_pre_header
      _
    $region3: #{tpu_custom_call.1} parent=1 // loop_header
      %s22 = sphi 0, %s26
      %p23 = scmp.ge.s32.totalorder %s22, 4
      %s32 = sphi 0, %s34
      %s35 = sphi 0, %s32
      %s36 = sphi 0, %s35
      %s52 = sphi 0, %s36
      %s56 = sphi 0, %s56
      %s58 = sphi 0, %s56
      %s59 = sphi 0, %s58
      %s73 = sphi 0, %s59
      %s77 = sphi 0, %s77
      %s79 = sphi 0, %s77
      %s80 = sphi 0, %s79
      %s94 = sphi 0, %s80
      %s98 = sphi 0, %s98
      %s100 = sphi 0, %s98
      %s101 = sphi 0, %s100
      %s115 = sphi 0, %s101
      %s119 = sphi 0, %s119
      %s121 = sphi 0, %s119
      %s122 = sphi 0, %s121
      %s136 = sphi 0, %s122
      %s140 = sphi 0, %s140
      %s142 = sphi 0, %s140
      %s143 = sphi 0, %s142
      %s157 = sphi 0, %s143
      %s161 = sphi 0, %s161
      %s163 = sphi 0, %s161
      %s164 = sphi 0, %s163
      %s178 = sphi 0, %s164
      %s182 = sphi 0, %s182
      %s184 = sphi 0, %s182
      %s185 = sphi 0, %s184
      %s199 = sphi 0, %s185
      %s203 = sphi 0, %s203
      %s205 = sphi 0, %s203
      %s206 = sphi 0, %s205
      %s220 = sphi 0, %s206
      %s224 = sphi 0, %s224
      %s226 = sphi 0, %s224
      %s227 = sphi 0, %s226
      %s241 = sphi 0, %s227
      %s245 = sphi 0, %s245
      %s247 = sphi 0, %s245
      %s248 = sphi 0, %s247
      %s262 = sphi 0, %s248
      %s268 = sphi 0, %s270
      %s271 = sphi 0, %s268
      %s272 = sphi 0, %s271
      %s288 = sphi 0, %s272
    $region4: #{tpu_custom_call.1} parent=1 // loop_header_branch
      %25 = sbr.rel (%p23) target = $region8
    $region5: #{tpu_custom_call.1} parent=1 // loop_body
      %s27 = ssub.s32 %s22, 1
      %s28 = ssub.s32 %s22, 2
      %s29 = sadd.s32 %s22, 1
      %s30 = ssub.s32 %s22, %s29
      %p31 = scmp.eq.s32.totalorder %s30, 0
      %s33 = sadd.s32 %s32, 1
      %s34 = scalar_select %p31, %s32, %s33
      %p37 = pneg %p31
      %p38 = scmp.eq.s32.totalorder %s22, 1
      %p39 = por %p37, %p38
      %p40 = scmp.ne.s32.totalorder %s32, %s35
      %p41 = scmp.eq.s32.totalorder %s22, 0
      %p42 = por %p40, %p41
      %p43 = scmp.ne.s32.totalorder %s32, %s35
      %p44 = scmp.eq.s32.totalorder %s27, 1
      %p45 = por %p43, %p44
      %p46 = scmp.ne.s32.totalorder %s35, %s36
      %p47 = scmp.eq.s32.totalorder %s27, 0
      %p48 = por %p46, %p47
      %p49 = scmp.ne.s32.totalorder %s35, %s36
      %p50 = scmp.eq.s32.totalorder %s28, 1
      %p51 = por %p49, %p50
      %p53 = scmp.ne.s32.totalorder %s36, %s52
      %p54 = scmp.eq.s32.totalorder %s28, 0
      %p55 = por %p53, %p54
      %s57 = sadd.s32 %s56, 1
      %p60 = scmp.eq.s32.totalorder %s22, 1
      %p61 = scmp.ne.s32.totalorder %s56, %s58
      %p62 = scmp.eq.s32.totalorder %s22, 0
      %p63 = por %p61, %p62
      %p64 = scmp.ne.s32.totalorder %s56, %s58
      %p65 = scmp.eq.s32.totalorder %s27, 1
      %p66 = por %p64, %p65
      %p67 = scmp.ne.s32.totalorder %s58, %s59
      %p68 = scmp.eq.s32.totalorder %s27, 0
      %p69 = por %p67, %p68
      %p70 = scmp.ne.s32.totalorder %s58, %s59
      %p71 = scmp.eq.s32.totalorder %s28, 1
      %p72 = por %p70, %p71
      %p74 = scmp.ne.s32.totalorder %s59, %s73
      %p75 = scmp.eq.s32.totalorder %s28, 0
      %p76 = por %p74, %p75
      %s78 = sadd.s32 %s77, 1
      %p81 = scmp.eq.s32.totalorder %s22, 1
      %p82 = scmp.ne.s32.totalorder %s77, %s79
      %p83 = scmp.eq.s32.totalorder %s22, 0
      %p84 = por %p82, %p83
      %p85 = scmp.ne.s32.totalorder %s77, %s79
      %p86 = scmp.eq.s32.totalorder %s27, 1
      %p87 = por %p85, %p86
      %p88 = scmp.ne.s32.totalorder %s79, %s80
      %p89 = scmp.eq.s32.totalorder %s27, 0
      %p90 = por %p88, %p89
      %p91 = scmp.ne.s32.totalorder %s79, %s80
      %p92 = scmp.eq.s32.totalorder %s28, 1
      %p93 = por %p91, %p92
      %p95 = scmp.ne.s32.totalorder %s80, %s94
      %p96 = scmp.eq.s32.totalorder %s28, 0
      %p97 = por %p95, %p96
      %s99 = sadd.s32 %s98, 1
      %p102 = scmp.eq.s32.totalorder %s22, 1
      %p103 = scmp.ne.s32.totalorder %s98, %s100
      %p104 = scmp.eq.s32.totalorder %s22, 0
      %p105 = por %p103, %p104
      %p106 = scmp.ne.s32.totalorder %s98, %s100
      %p107 = scmp.eq.s32.totalorder %s27, 1
      %p108 = por %p106, %p107
      %p109 = scmp.ne.s32.totalorder %s100, %s101
      %p110 = scmp.eq.s32.totalorder %s27, 0
      %p111 = por %p109, %p110
      %p112 = scmp.ne.s32.totalorder %s100, %s101
      %p113 = scmp.eq.s32.totalorder %s28, 1
      %p114 = por %p112, %p113
      %p116 = scmp.ne.s32.totalorder %s101, %s115
      %p117 = scmp.eq.s32.totalorder %s28, 0
      %p118 = por %p116, %p117
      %s120 = sadd.s32 %s119, 1
      %p123 = scmp.eq.s32.totalorder %s22, 1
      %p124 = scmp.ne.s32.totalorder %s119, %s121
      %p125 = scmp.eq.s32.totalorder %s22, 0
      %p126 = por %p124, %p125
      %p127 = scmp.ne.s32.totalorder %s119, %s121
      %p128 = scmp.eq.s32.totalorder %s27, 1
      %p129 = por %p127, %p128
      %p130 = scmp.ne.s32.totalorder %s121, %s122
      %p131 = scmp.eq.s32.totalorder %s27, 0
      %p132 = por %p130, %p131
      %p133 = scmp.ne.s32.totalorder %s121, %s122
      %p134 = scmp.eq.s32.totalorder %s28, 1
      %p135 = por %p133, %p134
      %p137 = scmp.ne.s32.totalorder %s122, %s136
      %p138 = scmp.eq.s32.totalorder %s28, 0
      %p139 = por %p137, %p138
      %s141 = sadd.s32 %s140, 1
      %p144 = scmp.eq.s32.totalorder %s22, 1
      %p145 = scmp.ne.s32.totalorder %s140, %s142
      %p146 = scmp.eq.s32.totalorder %s22, 0
      %p147 = por %p145, %p146
      %p148 = scmp.ne.s32.totalorder %s140, %s142
      %p149 = scmp.eq.s32.totalorder %s27, 1
      %p150 = por %p148, %p149
      %p151 = scmp.ne.s32.totalorder %s142, %s143
      %p152 = scmp.eq.s32.totalorder %s27, 0
      %p153 = por %p151, %p152
      %p154 = scmp.ne.s32.totalorder %s142, %s143
      %p155 = scmp.eq.s32.totalorder %s28, 1
      %p156 = por %p154, %p155
      %p158 = scmp.ne.s32.totalorder %s143, %s157
      %p159 = scmp.eq.s32.totalorder %s28, 0
      %p160 = por %p158, %p159
      %s162 = sadd.s32 %s161, 1
      %p165 = scmp.eq.s32.totalorder %s22, 1
      %p166 = scmp.ne.s32.totalorder %s161, %s163
      %p167 = scmp.eq.s32.totalorder %s22, 0
      %p168 = por %p166, %p167
      %p169 = scmp.ne.s32.totalorder %s161, %s163
      %p170 = scmp.eq.s32.totalorder %s27, 1
      %p171 = por %p169, %p170
      %p172 = scmp.ne.s32.totalorder %s163, %s164
      %p173 = scmp.eq.s32.totalorder %s27, 0
      %p174 = por %p172, %p173
      %p175 = scmp.ne.s32.totalorder %s163, %s164
      %p176 = scmp.eq.s32.totalorder %s28, 1
      %p177 = por %p175, %p176
      %p179 = scmp.ne.s32.totalorder %s164, %s178
      %p180 = scmp.eq.s32.totalorder %s28, 0
      %p181 = por %p179, %p180
      %s183 = sadd.s32 %s182, 1
      %p186 = scmp.eq.s32.totalorder %s22, 1
      %p187 = scmp.ne.s32.totalorder %s182, %s184
      %p188 = scmp.eq.s32.totalorder %s22, 0
      %p189 = por %p187, %p188
      %p190 = scmp.ne.s32.totalorder %s182, %s184
      %p191 = scmp.eq.s32.totalorder %s27, 1
      %p192 = por %p190, %p191
      %p193 = scmp.ne.s32.totalorder %s184, %s185
      %p194 = scmp.eq.s32.totalorder %s27, 0
      %p195 = por %p193, %p194
      %p196 = scmp.ne.s32.totalorder %s184, %s185
      %p197 = scmp.eq.s32.totalorder %s28, 1
      %p198 = por %p196, %p197
      %p200 = scmp.ne.s32.totalorder %s185, %s199
      %p201 = scmp.eq.s32.totalorder %s28, 0
      %p202 = por %p200, %p201
      %s204 = sadd.s32 %s203, 1
      %p207 = scmp.eq.s32.totalorder %s22, 1
      %p208 = scmp.ne.s32.totalorder %s203, %s205
      %p209 = scmp.eq.s32.totalorder %s22, 0
      %p210 = por %p208, %p209
      %p211 = scmp.ne.s32.totalorder %s203, %s205
      %p212 = scmp.eq.s32.totalorder %s27, 1
      %p213 = por %p211, %p212
      %p214 = scmp.ne.s32.totalorder %s205, %s206
      %p215 = scmp.eq.s32.totalorder %s27, 0
      %p216 = por %p214, %p215
      %p217 = scmp.ne.s32.totalorder %s205, %s206
      %p218 = scmp.eq.s32.totalorder %s28, 1
      %p219 = por %p217, %p218
      %p221 = scmp.ne.s32.totalorder %s206, %s220
      %p222 = scmp.eq.s32.totalorder %s28, 0
      %p223 = por %p221, %p222
      %s225 = sadd.s32 %s224, 1
      %p228 = scmp.eq.s32.totalorder %s22, 1
      %p229 = scmp.ne.s32.totalorder %s224, %s226
      %p230 = scmp.eq.s32.totalorder %s22, 0
      %p231 = por %p229, %p230
      %p232 = scmp.ne.s32.totalorder %s224, %s226
      %p233 = scmp.eq.s32.totalorder %s27, 1
      %p234 = por %p232, %p233
      %p235 = scmp.ne.s32.totalorder %s226, %s227
      %p236 = scmp.eq.s32.totalorder %s27, 0
      %p237 = por %p235, %p236
      %p238 = scmp.ne.s32.totalorder %s226, %s227
      %p239 = scmp.eq.s32.totalorder %s28, 1
      %p240 = por %p238, %p239
      %p242 = scmp.ne.s32.totalorder %s227, %s241
      %p243 = scmp.eq.s32.totalorder %s28, 0
      %p244 = por %p242, %p243
      %s246 = sadd.s32 %s245, 1
      %p249 = scmp.eq.s32.totalorder %s22, 1
      %p250 = scmp.ne.s32.totalorder %s245, %s247
      %p251 = scmp.eq.s32.totalorder %s22, 0
      %p252 = por %p250, %p251
      %p253 = scmp.ne.s32.totalorder %s245, %s247
      %p254 = scmp.eq.s32.totalorder %s27, 1
      %p255 = por %p253, %p254
      %p256 = scmp.ne.s32.totalorder %s247, %s248
      %p257 = scmp.eq.s32.totalorder %s27, 0
      %p258 = por %p256, %p257
      %p259 = scmp.ne.s32.totalorder %s247, %s248
      %p260 = scmp.eq.s32.totalorder %s28, 1
      %p261 = por %p259, %p260
      %p263 = scmp.ne.s32.totalorder %s248, %s262
      %p264 = scmp.eq.s32.totalorder %s28, 0
      %p265 = por %p263, %p264
      %s266 = ssub.s32 %s22, %s29
      %p267 = scmp.eq.s32.totalorder %s266, 0
      %s269 = sadd.s32 %s268, 1
      %s270 = scalar_select %p267, %s268, %s269
      %p273 = pneg %p267
      %p274 = scmp.eq.s32.totalorder %s22, 1
      %p275 = por %p273, %p274
      %p276 = scmp.ne.s32.totalorder %s268, %s271
      %p277 = scmp.eq.s32.totalorder %s22, 0
      %p278 = por %p276, %p277
      %p279 = scmp.ne.s32.totalorder %s268, %s271
      %p280 = scmp.eq.s32.totalorder %s27, 1
      %p281 = por %p279, %p280
      %p282 = scmp.ne.s32.totalorder %s271, %s272
      %p283 = scmp.eq.s32.totalorder %s27, 0
      %p284 = por %p282, %p283
      %p285 = scmp.ne.s32.totalorder %s271, %s272
      %p286 = scmp.eq.s32.totalorder %s28, 1
      %p287 = por %p285, %p286
      %p289 = scmp.ne.s32.totalorder %s272, %s288
      %p290 = scmp.eq.s32.totalorder %s28, 0
      %p291 = por %p289, %p290
      %p292 = scmp.le.s32.totalorder 1, %s22
      %p293 = scmp.lt.s32.totalorder %s22, 3
      %p294 = pnand %p292, %p293
      %p295 = pneg %p294
      // Predicated region
      $region9: #{tpu_custom_call.1} parent=5 // pred_check
        _
      $region10: #{tpu_custom_call.1} parent=5 // pred_check_branch
        %297 = sbr.rel (%p294) target = $region12
      $region11: #{tpu_custom_call.1} parent=5 // pred_region
        %s298 = ssub.s32 %s22, 1
        // Predicated region
        $region13: #{tpu_custom_call.1} parent=11 // pred_check
          %p299 = pneg %p69
        $region14: #{tpu_custom_call.1} parent=11 // pred_check_branch
          %301 = sbr.rel (%p299) target = $region16
        $region15: #{tpu_custom_call.1} parent=11 // pred_region
          _
        $region16: #{tpu_custom_call.1} parent=11 // pred_fallthru
          _
        // Predicated region
        $region17: #{tpu_custom_call.1} parent=11 // pred_check
          %p302 = pneg %p90
        $region18: #{tpu_custom_call.1} parent=11 // pred_check_branch
          %304 = sbr.rel (%p302) target = $region20
        $region19: #{tpu_custom_call.1} parent=11 // pred_region
          _
        $region20: #{tpu_custom_call.1} parent=11 // pred_fallthru
          _
        // Predicated region
        $region21: #{tpu_custom_call.1} parent=11 // pred_check
          %p305 = pneg %p111
        $region22: #{tpu_custom_call.1} parent=11 // pred_check_branch
          %307 = sbr.rel (%p305) target = $region24
        $region23: #{tpu_custom_call.1} parent=11 // pred_region
          _
        $region24: #{tpu_custom_call.1} parent=11 // pred_fallthru
          _
        // Predicated region
        $region25: #{tpu_custom_call.1} parent=11 // pred_check
          %p308 = pneg %p132
        $region26: #{tpu_custom_call.1} parent=11 // pred_check_branch
          %310 = sbr.rel (%p308) target = $region28
        $region27: #{tpu_custom_call.1} parent=11 // pred_region
          _
        $region28: #{tpu_custom_call.1} parent=11 // pred_fallthru
          _
        // Predicated region
        $region29: #{tpu_custom_call.1} parent=11 // pred_check
          %p311 = pneg %p153
        $region30: #{tpu_custom_call.1} parent=11 // pred_check_branch
          %313 = sbr.rel (%p311) target = $region32
        $region31: #{tpu_custom_call.1} parent=11 // pred_region
          %315 = vsyncadd [#allocation3], 0
          %s316 = sshll.u32 %s5, 4
          %s317 = int_to_ptr.hbm [resolvable:$true] %s316
          %s318 = sshll.u32 [#allocation2], 4
          %s319 = int_to_ptr.vmem [resolvable:$true] %s318
          %324 = dma.hbm_to_vmem [thread:$0]  %s317, 2048, %s319, [#allocation3], 64, 64, 4
        $region32: #{tpu_custom_call.1} parent=11 // pred_fallthru
          _
        // Predicated region
        $region33: #{tpu_custom_call.1} parent=11 // pred_check
          %p325 = pneg %p174
        $region34: #{tpu_custom_call.1} parent=11 // pred_check_branch
          %327 = sbr.rel (%p325) target = $region36
        $region35: #{tpu_custom_call.1} parent=11 // pred_region
          _
        $region36: #{tpu_custom_call.1} parent=11 // pred_fallthru
          _
        // Predicated region
        $region37: #{tpu_custom_call.1} parent=11 // pred_check
          %p328 = pneg %p195
        $region38: #{tpu_custom_call.1} parent=11 // pred_check_branch
          %330 = sbr.rel (%p328) target = $region40
        $region39: #{tpu_custom_call.1} parent=11 // pred_region
          _
        $region40: #{tpu_custom_call.1} parent=11 // pred_fallthru
          _
        // Predicated region
        $region41: #{tpu_custom_call.1} parent=11 // pred_check
          %p331 = pneg %p216
        $region42: #{tpu_custom_call.1} parent=11 // pred_check_branch
          %333 = sbr.rel (%p331) target = $region44
        $region43: #{tpu_custom_call.1} parent=11 // pred_region
          _
        $region44: #{tpu_custom_call.1} parent=11 // pred_fallthru
          _
        // Predicated region
        $region45: #{tpu_custom_call.1} parent=11 // pred_check
          %p334 = pneg %p237
        $region46: #{tpu_custom_call.1} parent=11 // pred_check_branch
          %336 = sbr.rel (%p334) target = $region48
        $region47: #{tpu_custom_call.1} parent=11 // pred_region
          %338 = vsyncadd [#allocation6], 0
          %s339 = sshll.u32 %s9, 4
          %s340 = int_to_ptr.hbm [resolvable:$true] %s339
          %s341 = sshll.u32 [#allocation5], 4
          %s342 = int_to_ptr.vmem [resolvable:$true] %s341
          %347 = dma.hbm_to_vmem [thread:$0]  %s340, 2048, %s342, [#allocation6], 128, 128, 8
        $region48: #{tpu_custom_call.1} parent=11 // pred_fallthru
          _
        // Predicated region
        $region49: #{tpu_custom_call.1} parent=11 // pred_check
          %p348 = pneg %p258
        $region50: #{tpu_custom_call.1} parent=11 // pred_check_branch
          %350 = sbr.rel (%p348) target = $region52
        $region51: #{tpu_custom_call.1} parent=11 // pred_region
          _
        $region52: #{tpu_custom_call.1} parent=11 // pred_fallthru
          _
      $region12: #{tpu_custom_call.1} parent=5 // pred_fallthru
        _
      %p351 = scmp.lt.s32.totalorder %s22, 2
      // Predicated region
      $region53: #{tpu_custom_call.1} parent=5 // pred_check
        %p352 = pneg %p351
      $region54: #{tpu_custom_call.1} parent=5 // pred_check_branch
        %354 = sbr.rel (%p352) target = $region56
      $region55: #{tpu_custom_call.1} parent=5 // pred_region
        // Predicated region
        $region57: #{tpu_custom_call.1} parent=55 // pred_check
          %p355 = pneg %p42
        $region58: #{tpu_custom_call.1} parent=55 // pred_check_branch
          %357 = sbr.rel (%p355) target = $region60
        $region59: #{tpu_custom_call.1} parent=55 // pred_region
          %s358 = smul.u32 2, %s22
          %p359 = scmp.lt.s32.totalorder %s358, 3
          %s360 = scalar_select %p359, %s358, 3
          %s361 = smul.addr %s360, 8
          %s362 = scalar_lea.vmem %s0, %s361
          %s363 = smul.u32 2, %s22
        $region60: #{tpu_custom_call.1} parent=55 // pred_fallthru
          _
      $region56: #{tpu_custom_call.1} parent=5 // pred_fallthru
        _
      %p364 = scmp.le.s32.totalorder 1, %s22
      %p365 = scmp.lt.s32.totalorder %s22, 3
      %p366 = pnand %p364, %p365
      %p367 = pneg %p366
      // Predicated region
      $region61: #{tpu_custom_call.1} parent=5 // pred_check
        _
      $region62: #{tpu_custom_call.1} parent=5 // pred_check_branch
        %369 = sbr.rel (%p366) target = $region64
      $region63: #{tpu_custom_call.1} parent=5 // pred_region
        %s370 = ssub.s32 %s22, 1
        // Predicated region
        $region65: #{tpu_custom_call.1} parent=63 // pred_check
          %p371 = pneg %p153
        $region66: #{tpu_custom_call.1} parent=63 // pred_check_branch
          %373 = sbr.rel (%p371) target = $region68
        $region67: #{tpu_custom_call.1} parent=63 // pred_region
          %375 = dma.done [#allocation3], 2048
        $region68: #{tpu_custom_call.1} parent=63 // pred_fallthru
          _
        // Predicated region
        $region69: #{tpu_custom_call.1} parent=63 // pred_check
          %p376 = pneg %p237
        $region70: #{tpu_custom_call.1} parent=63 // pred_check_branch
          %378 = sbr.rel (%p376) target = $region72
        $region71: #{tpu_custom_call.1} parent=63 // pred_region
          %380 = dma.done [#allocation6], 2048
        $region72: #{tpu_custom_call.1} parent=63 // pred_fallthru
          _
        %s381 = smul.u32 2, %s27
        %p382 = scmp.lt.s32.totalorder %s381, 3
        %s383 = scalar_select %p382, %s381, 3
        %s384 = smul.addr %s383, 8
        %s385 = scalar_lea.vmem %s0, %s384
        %p386 = pneg %p48
        %p387 = pneg %p45
        %p388 = pneg %p69
        %p389 = pneg %p66
        %p390 = pneg %p90
        %p391 = pneg %p87
        %p392 = pneg %p111
        %p393 = pneg %p108
        %p394 = pneg %p132
        %p395 = pneg %p129
        %p396 = pneg %p153
        %p397 = pneg %p150
        %p398 = pneg %p174
        %p399 = pneg %p171
        %p400 = pneg %p195
        %p401 = pneg %p192
        %p402 = pneg %p216
        %p403 = pneg %p213
        %p404 = pneg %p237
        %p405 = pneg %p234
        %p406 = pneg %p258
        %p407 = pneg %p255
        %p408 = pneg %p284
        %p409 = pneg %p281
        %s410 = sand.u32 %s271, 1
        %s411 = scalar_lea.sflag [#allocation4], %s410
        %s412 = sand.u32 %s271, 1
        %s413 = smul.addr %s412, 32
        %s414 = scalar_lea.vmem [#allocation7], %s413
        %s415 = smul.u32 2, %s27
        %p416 = scmp.lt.s32.totalorder %s415, 3
        %s417 = scalar_select %p416, %s415, 3
        %s418 = smul.addr %s417, 8
        %s419 = scalar_lea.vmem %s0, %s418
        %s420 = smul.u32 2, %s27
        %s421 = smul.u32 2, %s27
        %v423 = vld [vmem:[%s419] sm:$0xff]
        %v424 = vld [vmem:[%s419 + $0x8] sm:$0xff]
        %v425 = vpack.c.bf16 %v424, %v423
        %v426 = vld [vmem:[%s1] sm:$0xf]
        %v427 = vld [vmem:[%s1 + $0x4] sm:$0xf]
        %v428 = vld [vmem:[%s2] sm:$0x1]
        %v430 = vperm.slane %v428, 0
        %v434 = vunpack.c.l.b16 %v426
        %v435 = vunpack.c.l.b16 %v427
        %v436 = vpack.c.b16 %v435, %v434
        %vm438 = vcmask 130048
        %v440 = vsel %vm438, %v425, 0
        %442 = vmatpush.bf16.msra.mxu0 0
        %443 = vmatpush.bf16.msra.mxu0 0
        %444 = vmatpush.bf16.msra.mxu0 0
        %445 = vmatpush.bf16.msra.mxu0 0
        %446 = vmatpush.bf16.msra.mxu0 0
        %447 = vmatpush.bf16.msra.mxu0 0
        %448 = vmatpush.bf16.msra.mxu0 0
        %449 = vmatpush.bf16.msra.mxu0 %v436
        %450 = vmatmul.bf16.gmra.mxu0 %v440
        %v451 = vpop.f32.mrf.mxu0
        %v452 = vadd.f32 %v430, %v451
        %v453 = vpop.f32.mrf.mxu0
        %v454 = vadd.f32 %v430, %v453
        %455 = vdwg.mxu0
        %v456 = vmax.f32 %v452, 0.0
        %v457 = vmax.f32 %v454, 0.0
        %v458 = vld [vmem:[%s3] sm:$0x1]
        %v460 = vperm.slane %v458, 0
        %v462 = vmul.f32 %v456, %v460
        %v463 = vmul.f32 %v457, %v460
        %v464 = vld [vmem:[%s4] sm:$0x1]
        %v466 = vperm.slane %v464, 0
        %v468 = vadd.f32 %v462, %v466
        %v469 = vadd.f32 %v463, %v466
        %v470 = vpack.c.bf16 %v469, %v468
        %v471 = vld [vmem:[#allocation2] sm:$0xf]
        %v472 = vld [vmem:[#allocation2 + $0x4] sm:$0xf]
        %v473 = vld [vmem:[#allocation2 + $0x8] sm:$0xf]
        %v474 = vld [vmem:[#allocation2 + $0xc] sm:$0xf]
        %v475 = vld [vmem:[#allocation2 + $0x10] sm:$0xf]
        %v476 = vld [vmem:[#allocation2 + $0x14] sm:$0xf]
        %v477 = vld [vmem:[#allocation2 + $0x18] sm:$0xf]
        %v478 = vld [vmem:[#allocation2 + $0x1c] sm:$0xf]
        %v479 = vld [vmem:[#allocation2 + $0x20] sm:$0xf]
        %v480 = vld [vmem:[#allocation2 + $0x24] sm:$0xf]
        %v481 = vld [vmem:[#allocation2 + $0x28] sm:$0xf]
        %v482 = vld [vmem:[#allocation2 + $0x2c] sm:$0xf]
        %v483 = vld [vmem:[#allocation2 + $0x30] sm:$0xf]
        %v484 = vld [vmem:[#allocation2 + $0x34] sm:$0xf]
        %v485 = vld [vmem:[#allocation2 + $0x38] sm:$0xf]
        %v486 = vld [vmem:[#allocation2 + $0x3c] sm:$0xf]
        %v487 = vld [vmem:[%s6] sm:$0x1]
        %v489 = vperm.slane %v487, 0
        %v507 = vunpack.c.l.b16 %v471
        %v508 = vunpack.c.l.b16 %v472
        %v509 = vunpack.c.l.b16 %v473
        %v510 = vunpack.c.l.b16 %v474
        %v511 = vunpack.c.l.b16 %v475
        %v512 = vunpack.c.l.b16 %v476
        %v513 = vunpack.c.l.b16 %v477
        %v514 = vunpack.c.l.b16 %v478
        %v515 = vunpack.c.l.b16 %v479
        %v516 = vunpack.c.l.b16 %v480
        %v517 = vunpack.c.l.b16 %v481
        %v518 = vunpack.c.l.b16 %v482
        %v519 = vunpack.c.l.b16 %v483
        %v520 = vunpack.c.l.b16 %v484
        %v521 = vunpack.c.l.b16 %v485
        %v522 = vunpack.c.l.b16 %v486
        %v523 = vpack.c.b16 %v508, %v507
        %v524 = vpack.c.b16 %v510, %v509
        %v525 = vpack.c.b16 %v512, %v511
        %v526 = vpack.c.b16 %v514, %v513
        %v527 = vpack.c.b16 %v516, %v515
        %v528 = vpack.c.b16 %v518, %v517
        %v529 = vpack.c.b16 %v520, %v519
        %v530 = vpack.c.b16 %v522, %v521
        %539 = vmatpush.bf16.msra.mxu0 %v530
        %540 = vmatpush.bf16.msra.mxu0 %v529
        %541 = vmatpush.bf16.msra.mxu0 %v528
        %542 = vmatpush.bf16.msra.mxu0 %v527
        %543 = vmatpush.bf16.msra.mxu0 %v526
        %544 = vmatpush.bf16.msra.mxu0 %v525
        %545 = vmatpush.bf16.msra.mxu0 %v524
        %546 = vmatpush.bf16.msra.mxu0 %v523
        %547 = vmatmul.bf16.gmra.mxu0 %v470
        %v548 = vpop.f32.mrf.mxu0
        %v549 = vadd.f32 %v489, %v548
        %v550 = vpop.f32.mrf.mxu0
        %v551 = vadd.f32 %v489, %v550
        %552 = vdwg.mxu0
        %v553 = vmax.f32 %v549, 0.0
        %v554 = vmax.f32 %v551, 0.0
        %v555 = vld [vmem:[%s7] sm:$0x1]
        %v557 = vperm.slane %v555, 0
        %v559 = vmul.f32 %v553, %v557
        %v560 = vmul.f32 %v554, %v557
        %v561 = vadd.f32 %v468, %v559
        %v562 = vadd.f32 %v469, %v560
        %v563 = vld [vmem:[%s8] sm:$0x1]
        %v565 = vperm.slane %v563, 0
        %v567 = vadd.f32 %v561, %v565
        %v568 = vadd.f32 %v562, %v565
        %v569 = vpack.c.bf16 %v568, %v567
        %s570 = scalar_lea.vmem [#allocation2], 64
        %v571 = vld [vmem:[%s570] sm:$0xf]
        %v572 = vld [vmem:[%s570 + $0x4] sm:$0xf]
        %v573 = vld [vmem:[%s570 + $0x8] sm:$0xf]
        %v574 = vld [vmem:[%s570 + $0xc] sm:$0xf]
        %v575 = vld [vmem:[%s570 + $0x10] sm:$0xf]
        %v576 = vld [vmem:[%s570 + $0x14] sm:$0xf]
        %v577 = vld [vmem:[%s570 + $0x18] sm:$0xf]
        %v578 = vld [vmem:[%s570 + $0x1c] sm:$0xf]
        %v579 = vld [vmem:[%s570 + $0x20] sm:$0xf]
        %v580 = vld [vmem:[%s570 + $0x24] sm:$0xf]
        %v581 = vld [vmem:[%s570 + $0x28] sm:$0xf]
        %v582 = vld [vmem:[%s570 + $0x2c] sm:$0xf]
        %v583 = vld [vmem:[%s570 + $0x30] sm:$0xf]
        %v584 = vld [vmem:[%s570 + $0x34] sm:$0xf]
        %v585 = vld [vmem:[%s570 + $0x38] sm:$0xf]
        %v586 = vld [vmem:[%s570 + $0x3c] sm:$0xf]
        %s587 = scalar_lea.vmem %s6, 1
        %v588 = vld [vmem:[%s587] sm:$0x1]
        %v590 = vperm.slane %v588, 0
        %v608 = vunpack.c.l.b16 %v571
        %v609 = vunpack.c.l.b16 %v572
        %v610 = vunpack.c.l.b16 %v573
        %v611 = vunpack.c.l.b16 %v574
        %v612 = vunpack.c.l.b16 %v575
        %v613 = vunpack.c.l.b16 %v576
        %v614 = vunpack.c.l.b16 %v577
        %v615 = vunpack.c.l.b16 %v578
        %v616 = vunpack.c.l.b16 %v579
        %v617 = vunpack.c.l.b16 %v580
        %v618 = vunpack.c.l.b16 %v581
        %v619 = vunpack.c.l.b16 %v582
        %v620 = vunpack.c.l.b16 %v583
        %v621 = vunpack.c.l.b16 %v584
        %v622 = vunpack.c.l.b16 %v585
        %v623 = vunpack.c.l.b16 %v586
        %v624 = vpack.c.b16 %v609, %v608
        %v625 = vpack.c.b16 %v611, %v610
        %v626 = vpack.c.b16 %v613, %v612
        %v627 = vpack.c.b16 %v615, %v614
        %v628 = vpack.c.b16 %v617, %v616
        %v629 = vpack.c.b16 %v619, %v618
        %v630 = vpack.c.b16 %v621, %v620
        %v631 = vpack.c.b16 %v623, %v622
        %640 = vmatpush.bf16.msra.mxu0 %v631
        %641 = vmatpush.bf16.msra.mxu0 %v630
        %642 = vmatpush.bf16.msra.mxu0 %v629
        %643 = vmatpush.bf16.msra.mxu0 %v628
        %644 = vmatpush.bf16.msra.mxu0 %v627
        %645 = vmatpush.bf16.msra.mxu0 %v626
        %646 = vmatpush.bf16.msra.mxu0 %v625
        %647 = vmatpush.bf16.msra.mxu0 %v624
        %648 = vmatmul.bf16.gmra.mxu0 %v569
        %v649 = vpop.f32.mrf.mxu0
        %v650 = vadd.f32 %v590, %v649
        %v651 = vpop.f32.mrf.mxu0
        %v652 = vadd.f32 %v590, %v651
        %653 = vdwg.mxu0
        %v654 = vmax.f32 %v650, 0.0
        %v655 = vmax.f32 %v652, 0.0
        %s656 = scalar_lea.vmem %s7, 1
        %v657 = vld [vmem:[%s656] sm:$0x1]
        %v659 = vperm.slane %v657, 0
        %v661 = vmul.f32 %v654, %v659
        %v662 = vmul.f32 %v655, %v659
        %v663 = vadd.f32 %v567, %v661
        %v664 = vadd.f32 %v568, %v662
        %s665 = scalar_lea.vmem %s8, 1
        %v666 = vld [vmem:[%s665] sm:$0x1]
        %v668 = vperm.slane %v666, 0
        %v670 = vadd.f32 %v663, %v668
        %v671 = vadd.f32 %v664, %v668
        %v672 = vpack.c.bf16 %v671, %v670
        %v673 = vld [vmem:[#allocation5] sm:$0xff]
        %v674 = vld [vmem:[#allocation5 + $0x8] sm:$0xff]
        %v675 = vld [vmem:[#allocation5 + $0x10] sm:$0xff]
        %v676 = vld [vmem:[#allocation5 + $0x18] sm:$0xff]
        %v677 = vld [vmem:[#allocation5 + $0x20] sm:$0xff]
        %v678 = vld [vmem:[#allocation5 + $0x28] sm:$0xff]
        %v679 = vld [vmem:[#allocation5 + $0x30] sm:$0xff]
        %v680 = vld [vmem:[#allocation5 + $0x38] sm:$0xff]
        %v681 = vld [vmem:[#allocation5 + $0x40] sm:$0xff]
        %v682 = vld [vmem:[#allocation5 + $0x48] sm:$0xff]
        %v683 = vld [vmem:[#allocation5 + $0x50] sm:$0xff]
        %v684 = vld [vmem:[#allocation5 + $0x58] sm:$0xff]
        %v685 = vld [vmem:[#allocation5 + $0x60] sm:$0xff]
        %v686 = vld [vmem:[#allocation5 + $0x68] sm:$0xff]
        %v687 = vld [vmem:[#allocation5 + $0x70] sm:$0xff]
        %v688 = vld [vmem:[#allocation5 + $0x78] sm:$0xff]
        %v689 = vld [vmem:[%s10] sm:$0x3]
        %v691 = vperm.slane %v689, 0
        %v692 = vperm.slane %v689, 1
        %v711 = vunpack.c.l.b16 %v673
        %v712 = vunpack.c.h.b16 %v673
        %v713 = vunpack.c.l.b16 %v674
        %v714 = vunpack.c.h.b16 %v674
        %v715 = vunpack.c.l.b16 %v675
        %v716 = vunpack.c.h.b16 %v675
        %v717 = vunpack.c.l.b16 %v676
        %v718 = vunpack.c.h.b16 %v676
        %v719 = vunpack.c.l.b16 %v677
        %v720 = vunpack.c.h.b16 %v677
        %v721 = vunpack.c.l.b16 %v678
        %v722 = vunpack.c.h.b16 %v678
        %v723 = vunpack.c.l.b16 %v679
        %v724 = vunpack.c.h.b16 %v679
        %v725 = vunpack.c.l.b16 %v680
        %v726 = vunpack.c.h.b16 %v680
        %v727 = vunpack.c.l.b16 %v681
        %v728 = vunpack.c.h.b16 %v681
        %v729 = vunpack.c.l.b16 %v682
        %v730 = vunpack.c.h.b16 %v682
        %v731 = vunpack.c.l.b16 %v683
        %v732 = vunpack.c.h.b16 %v683
        %v733 = vunpack.c.l.b16 %v684
        %v734 = vunpack.c.h.b16 %v684
        %v735 = vunpack.c.l.b16 %v685
        %v736 = vunpack.c.h.b16 %v685
        %v737 = vunpack.c.l.b16 %v686
        %v738 = vunpack.c.h.b16 %v686
        %v739 = vunpack.c.l.b16 %v687
        %v740 = vunpack.c.h.b16 %v687
        %v741 = vunpack.c.l.b16 %v688
        %v742 = vunpack.c.h.b16 %v688
        %v743 = vpack.c.b16 %v713, %v711
        %v744 = vpack.c.b16 %v714, %v712
        %v745 = vpack.c.b16 %v717, %v715
        %v746 = vpack.c.b16 %v718, %v716
        %v747 = vpack.c.b16 %v721, %v719
        %v748 = vpack.c.b16 %v722, %v720
        %v749 = vpack.c.b16 %v725, %v723
        %v750 = vpack.c.b16 %v726, %v724
        %v751 = vpack.c.b16 %v729, %v727
        %v752 = vpack.c.b16 %v730, %v728
        %v753 = vpack.c.b16 %v733, %v731
        %v754 = vpack.c.b16 %v734, %v732
        %v755 = vpack.c.b16 %v737, %v735
        %v756 = vpack.c.b16 %v738, %v736
        %v757 = vpack.c.b16 %v741, %v739
        %v758 = vpack.c.b16 %v742, %v740
        %775 = vmatpush.bf16.msra.mxu0 %v757
        %776 = vmatpush.bf16.msra.mxu0 %v755
        %777 = vmatpush.bf16.msra.mxu0 %v753
        %778 = vmatpush.bf16.msra.mxu0 %v751
        %779 = vmatpush.bf16.msra.mxu0 %v749
        %780 = vmatpush.bf16.msra.mxu0 %v747
        %781 = vmatpush.bf16.msra.mxu0 %v745
        %782 = vmatpush.bf16.msra.mxu0 %v743
        %783 = vmatmul.bf16.gmra.mxu0 %v672
        %v784 = vpop.f32.mrf.mxu0
        %v785 = vadd.f32 %v691, %v784
        %v786 = vpop.f32.mrf.mxu0
        %v787 = vadd.f32 %v691, %v786
        %788 = vdwg.mxu0
        %789 = vmatpush.bf16.msra.mxu0 %v758
        %790 = vmatpush.bf16.msra.mxu0 %v756
        %791 = vmatpush.bf16.msra.mxu0 %v754
        %792 = vmatpush.bf16.msra.mxu0 %v752
        %793 = vmatpush.bf16.msra.mxu0 %v750
        %794 = vmatpush.bf16.msra.mxu0 %v748
        %795 = vmatpush.bf16.msra.mxu0 %v746
        %796 = vmatpush.bf16.msra.mxu0 %v744
        %797 = vmatmul.bf16.gmra.mxu0 %v672
        %v798 = vpop.f32.mrf.mxu0
        %v799 = vadd.f32 %v692, %v798
        %v800 = vpop.f32.mrf.mxu0
        %v801 = vadd.f32 %v692, %v800
        %802 = vdwg.mxu0
        %803 = vst [vmem:[%s414] sm:$0xff] %v785
        %804 = vst [vmem:[%s414 + $0x10] sm:$0xff] %v787
        %v805 = vmax.f32 %v799, 0.0
        %v806 = vmax.f32 %v801, 0.0
        %vm807 = vcmp.ne.f32.partialorder %v799, %v799
        %vm808 = vcmp.ne.f32.partialorder %v801, %v801
        %v809 = vadd.f32 %v799, 0.0
        %v810 = vadd.f32 %v801, 0.0
        %v811 = vand.u32 2147483647, %v799
        %v812 = vand.u32 2147483647, %v801
        %v813 = vsub.f32 0.0, %v811
        %v814 = vsub.f32 0.0, %v812
        %v815 = vmul.f32 %v813, 1.442695
        %v816 = vpow.pop %v815
        %v817 = vmul.f32 %v814, 1.442695
        %v818 = vpow.pop %v817
        %v819 = vadd.f32 %v816, 1.0
        %v820 = vlog2.pop %v819
        %v821 = vmul.f32 %v820, 0.6931472
        %v822 = vmul.f32 -0.5, %v816
        %v823 = vadd.f32 %v822, 1.0
        %v824 = vmul.f32 %v823, %v816
        %v825 = vand.u32 2147483647, %v816
        %vm826 = vcmp.lt.f32.partialorder %v825, 0.0004427343
        %v827 = vsel %vm826, %v824, %v821
        %v828 = vadd.f32 %v818, 1.0
        %v829 = vlog2.pop %v828
        %v830 = vmul.f32 %v829, 0.6931472
        %v831 = vmul.f32 -0.5, %v818
        %v832 = vadd.f32 %v831, 1.0
        %v833 = vmul.f32 %v832, %v818
        %v834 = vand.u32 2147483647, %v818
        %vm835 = vcmp.lt.f32.partialorder %v834, 0.0004427343
        %v836 = vsel %vm835, %v833, %v830
        %v837 = vadd.f32 %v805, %v827
        %v838 = vadd.f32 %v806, %v836
        %v839 = vsel %vm807, %v809, %v837
        %v840 = vsel %vm808, %v810, %v838
        %841 = vst [vmem:[%s414 + $0x8] sm:$0xff] %v839
        %842 = vst [vmem:[%s414 + $0x18] sm:$0xff] %v840
        %s843 = sand.u32 %s271, 1
        %s844 = scalar_lea.sflag [#allocation4], %s843
        %s845 = sand.u32 %s271, 1
        %s846 = smul.addr %s845, 32
        %s847 = scalar_lea.vmem [#allocation7], %s846
        // Predicated region
        $region73: #{tpu_custom_call.1} parent=63 // pred_check
          %p848 = pneg %p281
        $region74: #{tpu_custom_call.1} parent=63 // pred_check_branch
          %850 = sbr.rel (%p848) target = $region76
        $region75: #{tpu_custom_call.1} parent=63 // pred_region
          %s851 = smul.u32 2, %s27
          %853 = vsyncadd %s844, 0
          %s854 = smul.addr %s851, 2
          %s855 = smul.addr %s854, 8
          %s856 = scalar_lea.hbm %s11, %s855
          %s857 = sshll.u32 %s847, 4
          %s858 = int_to_ptr.vmem [resolvable:$true] %s857
          %s859 = sshll.u32 %s856, 4
          %s860 = int_to_ptr.hbm [resolvable:$true] %s859
          %865 = dma.vmem_to_hbm [thread:$0]  %s858, 512, %s860, %s844, 256, 256, 16
        $region76: #{tpu_custom_call.1} parent=63 // pred_fallthru
          _
      $region64: #{tpu_custom_call.1} parent=5 // pred_fallthru
        _
      %p866 = scmp.le.s32.totalorder 2, %s22
      // Predicated region
      $region77: #{tpu_custom_call.1} parent=5 // pred_check
        %p867 = pneg %p866
      $region78: #{tpu_custom_call.1} parent=5 // pred_check_branch
        %869 = sbr.rel (%p867) target = $region80
      $region79: #{tpu_custom_call.1} parent=5 // pred_region
        %s870 = ssub.s32 %s22, 2
        // Predicated region
        $region81: #{tpu_custom_call.1} parent=79 // pred_check
          %p871 = pneg %p287
        $region82: #{tpu_custom_call.1} parent=79 // pred_check_branch
          %873 = sbr.rel (%p871) target = $region84
        $region83: #{tpu_custom_call.1} parent=79 // pred_region
          %s874 = sand.u32 %s272, 1
          %s875 = scalar_lea.sflag [#allocation4], %s874
          %s876 = sand.u32 %s272, 1
          %s877 = smul.addr %s876, 32
          %s878 = scalar_lea.vmem [#allocation7], %s877
          %880 = dma.done %s875, 512
        $region84: #{tpu_custom_call.1} parent=79 // pred_fallthru
          _
      $region80: #{tpu_custom_call.1} parent=5 // pred_fallthru
        _
    $region6: #{tpu_custom_call.1} parent=1 // loop_footer
      %s26 = sadd.s32 1, %s22
    $region7: #{tpu_custom_call.1} parent=1 // loop_footer_branch
      %21 = sbr.rel target = $region3
    $region8: #{tpu_custom_call.1} parent=1 // loop_exit
      _
    %881 = vsyncpa [#allocation3], 1
    %s882 = scalar_lea.sflag [#allocation3], 1
    %883 = vsyncpa %s882, 1
    %884 = vsyncpa [#allocation6], 1
    %885 = vsyncpa [#allocation4], 1
    %s886 = scalar_lea.sflag [#allocation4], 1
    %887 = vsyncpa %s886, 1

// kernel: tpu_custom_call.1
$region0: #{tpu_custom_call.1}
  #allocation0 [shape = 'u32[]', space=smem, size = 0x4, offset = 0x4, fixed_abs, tag = 'smem constant byte address 0x4 - core index']
  #allocation1 [shape = 'u32[72,128]{1,0:T(1,128)}', space=vmem, size = 0x9000, scoped, tag = 'internal scratch']
  %s0 = inlined_call_operand.vmem [shape: f32[32,16], index: 0, kind: input, shape index: {}]
  %s1 = inlined_call_operand.vmem [shape: bf16[16,128], index: 1, kind: input, shape index: {}]
  %s2 = inlined_call_operand.vmem [shape: f32[1,128], index: 2, kind: input, shape index: {}]
  %s3 = inlined_call_operand.vmem [shape: f32[1,128], index: 3, kind: input, shape index: {}]
  %s4 = inlined_call_operand.vmem [shape: f32[1,128], index: 4, kind: input, shape index: {}]
  %s5 = inlined_call_operand.hbm [shape: bf16[2,128,128], index: 5, kind: input, shape index: {}]
  %s6 = inlined_call_operand.vmem [shape: f32[2,1,128], index: 6, kind: input, shape index: {}]
  %s7 = inlined_call_operand.vmem [shape: f32[2,1,128], index: 7, kind: input, shape index: {}]
  %s8 = inlined_call_operand.vmem [shape: f32[2,1,128], index: 8, kind: input, shape index: {}]
  %s9 = inlined_call_operand.hbm [shape: bf16[128,256], index: 9, kind: input, shape index: {}]
  %s10 = inlined_call_operand.vmem [shape: f32[1,256], index: 10, kind: input, shape index: {}]
  %s11 = inlined_call_operand.hbm [shape: f32[32,256], index: 11, kind: output, shape index: {}]
  %s12 = sld [smem:[#allocation0]]
  $region85: #{tpu_custom_call.1} parent=0
    _
  %s14 = ssub.s32 1, %s12
  %s15 = scalar_select 0, %s14, %s12
  $region1: #{tpu_custom_call.1} parent=0
    #allocation2 [shape = 'u8[65536]{0}', space=vmem, size = 0x10000, scoped, tag = 'input window, operand 5, single buffered']
    #allocation3 [shape = 's32[2]{0}', space=sflag, size = 0x8, scoped, tag = 'scoped memory for tpu_custom_call.1']
    #allocation4 [shape = 's32[2]{0}', space=sflag, size = 0x8, scoped, tag = 'scoped memory for tpu_custom_call.1']
    #allocation5 [shape = 'u8[65536]{0}', space=vmem, size = 0x10000, scoped, tag = 'input window, operand 9, single buffered']
    #allocation6 [shape = 's32[1]{0}', space=sflag, size = 0x4, scoped, tag = 'scoped memory for tpu_custom_call.1']
    #allocation7 [shape = 'u8[32768]{0}', space=vmem, size = 0x8000, scoped, tag = 'output window, operand 0']
    %16 = vsyncpa [#allocation3], 0
    %17 = vsyncpa [#allocation6], 0
    %18 = vsyncpa [#allocation4], 0
    %s19 = scalar_lea.sflag [#allocation4], 1
    %20 = vsyncpa %s19, 0
    loop: start=0, step=1, limit=4
    $region2: #{tpu_custom_call.1} parent=1 // loop_pre_header
      _
    $region3: #{tpu_custom_call.1} parent=1 // loop_header
      %s22 = sphi 0, %s26
      %p23 = scmp.ge.s32.totalorder %s22, 4
      %s32 = sphi 0, %s34
      %s35 = sphi 0, %s32
      %s36 = sphi 0, %s35
      %s52 = sphi 0, %s36
      %s56 = sphi 0, %s56
      %s58 = sphi 0, %s56
      %s59 = sphi 0, %s58
      %s73 = sphi 0, %s59
      %s77 = sphi 0, %s77
      %s79 = sphi 0, %s77
      %s80 = sphi 0, %s79
      %s94 = sphi 0, %s80
      %s98 = sphi 0, %s98
      %s100 = sphi 0, %s98
      %s101 = sphi 0, %s100
      %s115 = sphi 0, %s101
      %s119 = sphi 0, %s119
      %s121 = sphi 0, %s119
      %s122 = sphi 0, %s121
      %s136 = sphi 0, %s122
      %s140 = sphi 0, %s140
      %s142 = sphi 0, %s140
      %s143 = sphi 0, %s142
      %s157 = sphi 0, %s143
      %s161 = sphi 0, %s161
      %s163 = sphi 0, %s161
      %s164 = sphi 0, %s163
      %s178 = sphi 0, %s164
      %s182 = sphi 0, %s182
      %s184 = sphi 0, %s182
      %s185 = sphi 0, %s184
      %s199 = sphi 0, %s185
      %s203 = sphi 0, %s203
      %s205 = sphi 0, %s203
      %s206 = sphi 0, %s205
      %s220 = sphi 0, %s206
      %s224 = sphi 0, %s224
      %s226 = sphi 0, %s224
      %s227 = sphi 0, %s226
      %s241 = sphi 0, %s227
      %s245 = sphi 0, %s245
      %s247 = sphi 0, %s245
      %s248 = sphi 0, %s247
      %s262 = sphi 0, %s248
      %s268 = sphi 0, %s270
      %s271 = sphi 0, %s268
      %s272 = sphi 0, %s271
      %s288 = sphi 0, %s272
    $region4: #{tpu_custom_call.1} parent=1 // loop_header_branch
      %25 = sbr.rel (%p23) target = $region8
    $region5: #{tpu_custom_call.1} parent=1 // loop_body
      %s27 = ssub.s32 %s22, 1
      %s28 = ssub.s32 %s22, 2
      %s29 = sadd.s32 %s22, 1
      %s30 = ssub.s32 %s22, %s29
      %p31 = scmp.eq.s32.totalorder %s30, 0
      %s33 = sadd.s32 %s32, 1
      %s34 = scalar_select %p31, %s32, %s33
      %p37 = pneg %p31
      %p38 = scmp.eq.s32.totalorder %s22, 1
      %p39 = por %p37, %p38
      %p40 = scmp.ne.s32.totalorder %s32, %s35
      %p41 = scmp.eq.s32.totalorder %s22, 0
      %p42 = por %p40, %p41
      %p43 = scmp.ne.s32.totalorder %s32, %s35
      %p44 = scmp.eq.s32.totalorder %s27, 1
      %p45 = por %p43, %p44
      %p46 = scmp.ne.s32.totalorder %s35, %s36
      %p47 = scmp.eq.s32.totalorder %s27, 0
      %p48 = por %p46, %p47
      %p49 = scmp.ne.s32.totalorder %s35, %s36
      %p50 = scmp.eq.s32.totalorder %s28, 1
      %p51 = por %p49, %p50
      %p53 = scmp.ne.s32.totalorder %s36, %s52
      %p54 = scmp.eq.s32.totalorder %s28, 0
      %p55 = por %p53, %p54
      %s57 = sadd.s32 %s56, 1
      %p60 = scmp.eq.s32.totalorder %s22, 1
      %p61 = scmp.ne.s32.totalorder %s56, %s58
      %p62 = scmp.eq.s32.totalorder %s22, 0
      %p63 = por %p61, %p62
      %p64 = scmp.ne.s32.totalorder %s56, %s58
      %p65 = scmp.eq.s32.totalorder %s27, 1
      %p66 = por %p64, %p65
      %p67 = scmp.ne.s32.totalorder %s58, %s59
      %p68 = scmp.eq.s32.totalorder %s27, 0
      %p69 = por %p67, %p68
      %p70 = scmp.ne.s32.totalorder %s58, %s59
      %p71 = scmp.eq.s32.totalorder %s28, 1
      %p72 = por %p70, %p71
      %p74 = scmp.ne.s32.totalorder %s59, %s73
      %p75 = scmp.eq.s32.totalorder %s28, 0
      %p76 = por %p74, %p75
      %s78 = sadd.s32 %s77, 1
      %p81 = scmp.eq.s32.totalorder %s22, 1
      %p82 = scmp.ne.s32.totalorder %s77, %s79
      %p83 = scmp.eq.s32.totalorder %s22, 0
      %p84 = por %p82, %p83
      %p85 = scmp.ne.s32.totalorder %s77, %s79
      %p86 = scmp.eq.s32.totalorder %s27, 1
      %p87 = por %p85, %p86
      %p88 = scmp.ne.s32.totalorder %s79, %s80
      %p89 = scmp.eq.s32.totalorder %s27, 0
      %p90 = por %p88, %p89
      %p91 = scmp.ne.s32.totalorder %s79, %s80
      %p92 = scmp.eq.s32.totalorder %s28, 1
      %p93 = por %p91, %p92
      %p95 = scmp.ne.s32.totalorder %s80, %s94
      %p96 = scmp.eq.s32.totalorder %s28, 0
      %p97 = por %p95, %p96
      %s99 = sadd.s32 %s98, 1
      %p102 = scmp.eq.s32.totalorder %s22, 1
      %p103 = scmp.ne.s32.totalorder %s98, %s100
      %p104 = scmp.eq.s32.totalorder %s22, 0
      %p105 = por %p103, %p104
      %p106 = scmp.ne.s32.totalorder %s98, %s100
      %p107 = scmp.eq.s32.totalorder %s27, 1
      %p108 = por %p106, %p107
      %p109 = scmp.ne.s32.totalorder %s100, %s101
      %p110 = scmp.eq.s32.totalorder %s27, 0
      %p111 = por %p109, %p110
      %p112 = scmp.ne.s32.totalorder %s100, %s101
      %p113 = scmp.eq.s32.totalorder %s28, 1
      %p114 = por %p112, %p113
      %p116 = scmp.ne.s32.totalorder %s101, %s115
      %p117 = scmp.eq.s32.totalorder %s28, 0
      %p118 = por %p116, %p117
      %s120 = sadd.s32 %s119, 1
      %p123 = scmp.eq.s32.totalorder %s22, 1
      %p124 = scmp.ne.s32.totalorder %s119, %s121
      %p125 = scmp.eq.s32.totalorder %s22, 0
      %p126 = por %p124, %p125
      %p127 = scmp.ne.s32.totalorder %s119, %s121
      %p128 = scmp.eq.s32.totalorder %s27, 1
      %p129 = por %p127, %p128
      %p130 = scmp.ne.s32.totalorder %s121, %s122
      %p131 = scmp.eq.s32.totalorder %s27, 0
      %p132 = por %p130, %p131
      %p133 = scmp.ne.s32.totalorder %s121, %s122
      %p134 = scmp.eq.s32.totalorder %s28, 1
      %p135 = por %p133, %p134
      %p137 = scmp.ne.s32.totalorder %s122, %s136
      %p138 = scmp.eq.s32.totalorder %s28, 0
      %p139 = por %p137, %p138
      %s141 = sadd.s32 %s140, 1
      %p144 = scmp.eq.s32.totalorder %s22, 1
      %p145 = scmp.ne.s32.totalorder %s140, %s142
      %p146 = scmp.eq.s32.totalorder %s22, 0
      %p147 = por %p145, %p146
      %p148 = scmp.ne.s32.totalorder %s140, %s142
      %p149 = scmp.eq.s32.totalorder %s27, 1
      %p150 = por %p148, %p149
      %p151 = scmp.ne.s32.totalorder %s142, %s143
      %p152 = scmp.eq.s32.totalorder %s27, 0
      %p153 = por %p151, %p152
      %p154 = scmp.ne.s32.totalorder %s142, %s143
      %p155 = scmp.eq.s32.totalorder %s28, 1
      %p156 = por %p154, %p155
      %p158 = scmp.ne.s32.totalorder %s143, %s157
      %p159 = scmp.eq.s32.totalorder %s28, 0
      %p160 = por %p158, %p159
      %s162 = sadd.s32 %s161, 1
      %p165 = scmp.eq.s32.totalorder %s22, 1
      %p166 = scmp.ne.s32.totalorder %s161, %s163
      %p167 = scmp.eq.s32.totalorder %s22, 0
      %p168 = por %p166, %p167
      %p169 = scmp.ne.s32.totalorder %s161, %s163
      %p170 = scmp.eq.s32.totalorder %s27, 1
      %p171 = por %p169, %p170
      %p172 = scmp.ne.s32.totalorder %s163, %s164
      %p173 = scmp.eq.s32.totalorder %s27, 0
      %p174 = por %p172, %p173
      %p175 = scmp.ne.s32.totalorder %s163, %s164
      %p176 = scmp.eq.s32.totalorder %s28, 1
      %p177 = por %p175, %p176
      %p179 = scmp.ne.s32.totalorder %s164, %s178
      %p180 = scmp.eq.s32.totalorder %s28, 0
      %p181 = por %p179, %p180
      %s183 = sadd.s32 %s182, 1
      %p186 = scmp.eq.s32.totalorder %s22, 1
      %p187 = scmp.ne.s32.totalorder %s182, %s184
      %p188 = scmp.eq.s32.totalorder %s22, 0
      %p189 = por %p187, %p188
      %p190 = scmp.ne.s32.totalorder %s182, %s184
      %p191 = scmp.eq.s32.totalorder %s27, 1
      %p192 = por %p190, %p191
      %p193 = scmp.ne.s32.totalorder %s184, %s185
      %p194 = scmp.eq.s32.totalorder %s27, 0
      %p195 = por %p193, %p194
      %p196 = scmp.ne.s32.totalorder %s184, %s185
      %p197 = scmp.eq.s32.totalorder %s28, 1
      %p198 = por %p196, %p197
      %p200 = scmp.ne.s32.totalorder %s185, %s199
      %p201 = scmp.eq.s32.totalorder %s28, 0
      %p202 = por %p200, %p201
      %s204 = sadd.s32 %s203, 1
      %p207 = scmp.eq.s32.totalorder %s22, 1
      %p208 = scmp.ne.s32.totalorder %s203, %s205
      %p209 = scmp.eq.s32.totalorder %s22, 0
      %p210 = por %p208, %p209
      %p211 = scmp.ne.s32.totalorder %s203, %s205
      %p212 = scmp.eq.s32.totalorder %s27, 1
      %p213 = por %p211, %p212
      %p214 = scmp.ne.s32.totalorder %s205, %s206
      %p215 = scmp.eq.s32.totalorder %s27, 0
      %p216 = por %p214, %p215
      %p217 = scmp.ne.s32.totalorder %s205, %s206
      %p218 = scmp.eq.s32.totalorder %s28, 1
      %p219 = por %p217, %p218
      %p221 = scmp.ne.s32.totalorder %s206, %s220
      %p222 = scmp.eq.s32.totalorder %s28, 0
      %p223 = por %p221, %p222
      %s225 = sadd.s32 %s224, 1
      %p228 = scmp.eq.s32.totalorder %s22, 1
      %p229 = scmp.ne.s32.totalorder %s224, %s226
      %p230 = scmp.eq.s32.totalorder %s22, 0
      %p231 = por %p229, %p230
      %p232 = scmp.ne.s32.totalorder %s224, %s226
      %p233 = scmp.eq.s32.totalorder %s27, 1
      %p234 = por %p232, %p233
      %p235 = scmp.ne.s32.totalorder %s226, %s227
      %p236 = scmp.eq.s32.totalorder %s27, 0
      %p237 = por %p235, %p236
      %p238 = scmp.ne.s32.totalorder %s226, %s227
      %p239 = scmp.eq.s32.totalorder %s28, 1
      %p240 = por %p238, %p239
      %p242 = scmp.ne.s32.totalorder %s227, %s241
      %p243 = scmp.eq.s32.totalorder %s28, 0
      %p244 = por %p242, %p243
      %s246 = sadd.s32 %s245, 1
      %p249 = scmp.eq.s32.totalorder %s22, 1
      %p250 = scmp.ne.s32.totalorder %s245, %s247
      %p251 = scmp.eq.s32.totalorder %s22, 0
      %p252 = por %p250, %p251
      %p253 = scmp.ne.s32.totalorder %s245, %s247
      %p254 = scmp.eq.s32.totalorder %s27, 1
      %p255 = por %p253, %p254
      %p256 = scmp.ne.s32.totalorder %s247, %s248
      %p257 = scmp.eq.s32.totalorder %s27, 0
      %p258 = por %p256, %p257
      %p259 = scmp.ne.s32.totalorder %s247, %s248
      %p260 = scmp.eq.s32.totalorder %s28, 1
      %p261 = por %p259, %p260
      %p263 = scmp.ne.s32.totalorder %s248, %s262
      %p264 = scmp.eq.s32.totalorder %s28, 0
      %p265 = por %p263, %p264
      %s266 = ssub.s32 %s22, %s29
      %p267 = scmp.eq.s32.totalorder %s266, 0
      %s269 = sadd.s32 %s268, 1
      %s270 = scalar_select %p267, %s268, %s269
      %p273 = pneg %p267
      %p274 = scmp.eq.s32.totalorder %s22, 1
      %p275 = por %p273, %p274
      %p276 = scmp.ne.s32.totalorder %s268, %s271
      %p277 = scmp.eq.s32.totalorder %s22, 0
      %p278 = por %p276, %p277
      %p279 = scmp.ne.s32.totalorder %s268, %s271
      %p280 = scmp.eq.s32.totalorder %s27, 1
      %p281 = por %p279, %p280
      %p282 = scmp.ne.s32.totalorder %s271, %s272
      %p283 = scmp.eq.s32.totalorder %s27, 0
      %p284 = por %p282, %p283
      %p285 = scmp.ne.s32.totalorder %s271, %s272
      %p286 = scmp.eq.s32.totalorder %s28, 1
      %p287 = por %p285, %p286
      %p289 = scmp.ne.s32.totalorder %s272, %s288
      %p290 = scmp.eq.s32.totalorder %s28, 0
      %p291 = por %p289, %p290
      %p292 = scmp.le.s32.totalorder 1, %s22
      %p293 = scmp.lt.s32.totalorder %s22, 3
      %p294 = pnand %p292, %p293
      %p295 = pneg %p294
      // Predicated region
      $region9: #{tpu_custom_call.1} parent=5 // pred_check
        _
      $region10: #{tpu_custom_call.1} parent=5 // pred_check_branch
        %297 = sbr.rel (%p294) target = $region12
      $region11: #{tpu_custom_call.1} parent=5 // pred_region
        %s298 = ssub.s32 %s22, 1
        // Predicated region
        $region13: #{tpu_custom_call.1} parent=11 // pred_check
          %p299 = pneg %p69
        $region14: #{tpu_custom_call.1} parent=11 // pred_check_branch
          %301 = sbr.rel (%p299) target = $region16
        $region15: #{tpu_custom_call.1} parent=11 // pred_region
          _
        $region16: #{tpu_custom_call.1} parent=11 // pred_fallthru
          _
        // Predicated region
        $region17: #{tpu_custom_call.1} parent=11 // pred_check
          %p302 = pneg %p90
        $region18: #{tpu_custom_call.1} parent=11 // pred_check_branch
          %304 = sbr.rel (%p302) target = $region20
        $region19: #{tpu_custom_call.1} parent=11 // pred_region
          _
        $region20: #{tpu_custom_call.1} parent=11 // pred_fallthru
          _
        // Predicated region
        $region21: #{tpu_custom_call.1} parent=11 // pred_check
          %p305 = pneg %p111
        $region22: #{tpu_custom_call.1} parent=11 // pred_check_branch
          %307 = sbr.rel (%p305) target = $region24
        $region23: #{tpu_custom_call.1} parent=11 // pred_region
          _
        $region24: #{tpu_custom_call.1} parent=11 // pred_fallthru
          _
        // Predicated region
        $region25: #{tpu_custom_call.1} parent=11 // pred_check
          %p308 = pneg %p132
        $region26: #{tpu_custom_call.1} parent=11 // pred_check_branch
          %310 = sbr.rel (%p308) target = $region28
        $region27: #{tpu_custom_call.1} parent=11 // pred_region
          _
        $region28: #{tpu_custom_call.1} parent=11 // pred_fallthru
          _
        // Predicated region
        $region29: #{tpu_custom_call.1} parent=11 // pred_check
          %p311 = pneg %p153
        $region30: #{tpu_custom_call.1} parent=11 // pred_check_branch
          %313 = sbr.rel (%p311) target = $region32
        $region31: #{tpu_custom_call.1} parent=11 // pred_region
          %315 = vsyncadd [#allocation3], 0
          %s316 = sshll.u32 %s5, 4
          %s317 = int_to_ptr.hbm [resolvable:$true] %s316
          %s318 = sshll.u32 [#allocation2], 4
          %s319 = int_to_ptr.vmem [resolvable:$true] %s318
          %324 = dma.hbm_to_vmem [thread:$0]  %s317, 2048, %s319, [#allocation3], 64, 64, 4
        $region32: #{tpu_custom_call.1} parent=11 // pred_fallthru
          _
        // Predicated region
        $region33: #{tpu_custom_call.1} parent=11 // pred_check
          %p325 = pneg %p174
        $region34: #{tpu_custom_call.1} parent=11 // pred_check_branch
          %327 = sbr.rel (%p325) target = $region36
        $region35: #{tpu_custom_call.1} parent=11 // pred_region
          _
        $region36: #{tpu_custom_call.1} parent=11 // pred_fallthru
          _
        // Predicated region
        $region37: #{tpu_custom_call.1} parent=11 // pred_check
          %p328 = pneg %p195
        $region38: #{tpu_custom_call.1} parent=11 // pred_check_branch
          %330 = sbr.rel (%p328) target = $region40
        $region39: #{tpu_custom_call.1} parent=11 // pred_region
          _
        $region40: #{tpu_custom_call.1} parent=11 // pred_fallthru
          _
        // Predicated region
        $region41: #{tpu_custom_call.1} parent=11 // pred_check
          %p331 = pneg %p216
        $region42: #{tpu_custom_call.1} parent=11 // pred_check_branch
          %333 = sbr.rel (%p331) target = $region44
        $region43: #{tpu_custom_call.1} parent=11 // pred_region
          _
        $region44: #{tpu_custom_call.1} parent=11 // pred_fallthru
          _
        // Predicated region
        $region45: #{tpu_custom_call.1} parent=11 // pred_check
          %p334 = pneg %p237
        $region46: #{tpu_custom_call.1} parent=11 // pred_check_branch
          %336 = sbr.rel (%p334) target = $region48
        $region47: #{tpu_custom_call.1} parent=11 // pred_region
          %338 = vsyncadd [#allocation6], 0
          %s339 = sshll.u32 %s9, 4
          %s340 = int_to_ptr.hbm [resolvable:$true] %s339
          %s341 = sshll.u32 [#allocation5], 4
          %s342 = int_to_ptr.vmem [resolvable:$true] %s341
          %347 = dma.hbm_to_vmem [thread:$0]  %s340, 2048, %s342, [#allocation6], 128, 128, 8
        $region48: #{tpu_custom_call.1} parent=11 // pred_fallthru
          _
        // Predicated region
        $region49: #{tpu_custom_call.1} parent=11 // pred_check
          %p348 = pneg %p258
        $region50: #{tpu_custom_call.1} parent=11 // pred_check_branch
          %350 = sbr.rel (%p348) target = $region52
        $region51: #{tpu_custom_call.1} parent=11 // pred_region
          _
        $region52: #{tpu_custom_call.1} parent=11 // pred_fallthru
          _
      $region12: #{tpu_custom_call.1} parent=5 // pred_fallthru
        _
      %p351 = scmp.lt.s32.totalorder %s22, 2
      // Predicated region
      $region53: #{tpu_custom_call.1} parent=5 // pred_check
        %p352 = pneg %p351
      $region54: #{tpu_custom_call.1} parent=5 // pred_check_branch
        %354 = sbr.rel (%p352) target = $region56
      $region55: #{tpu_custom_call.1} parent=5 // pred_region
        // Predicated region
        $region57: #{tpu_custom_call.1} parent=55 // pred_check
          %p355 = pneg %p42
        $region58: #{tpu_custom_call.1} parent=55 // pred_check_branch
          %357 = sbr.rel (%p355) target = $region60
        $region59: #{tpu_custom_call.1} parent=55 // pred_region
          %s358 = smul.u32 2, %s22
          %p359 = scmp.lt.s32.totalorder %s358, 3
          %s360 = scalar_select %p359, %s358, 3
          %s361 = smul.addr %s360, 8
          %s362 = scalar_lea.vmem %s0, %s361
          %s363 = smul.u32 2, %s22
        $region60: #{tpu_custom_call.1} parent=55 // pred_fallthru
          _
      $region56: #{tpu_custom_call.1} parent=5 // pred_fallthru
        _
      %p364 = scmp.le.s32.totalorder 1, %s22
      %p365 = scmp.lt.s32.totalorder %s22, 3
      %p366 = pnand %p364, %p365
      %p367 = pneg %p366
      // Predicated region
      $region61: #{tpu_custom_call.1} parent=5 // pred_check
        _
      $region62: #{tpu_custom_call.1} parent=5 // pred_check_branch
        %369 = sbr.rel (%p366) target = $region64
      $region63: #{tpu_custom_call.1} parent=5 // pred_region
        %s370 = ssub.s32 %s22, 1
        // Predicated region
        $region65: #{tpu_custom_call.1} parent=63 // pred_check
          %p371 = pneg %p153
        $region66: #{tpu_custom_call.1} parent=63 // pred_check_branch
          %373 = sbr.rel (%p371) target = $region68
        $region67: #{tpu_custom_call.1} parent=63 // pred_region
          %375 = dma.done [#allocation3], 2048
        $region68: #{tpu_custom_call.1} parent=63 // pred_fallthru
          _
        // Predicated region
        $region69: #{tpu_custom_call.1} parent=63 // pred_check
          %p376 = pneg %p237
        $region70: #{tpu_custom_call.1} parent=63 // pred_check_branch
          %378 = sbr.rel (%p376) target = $region72
        $region71: #{tpu_custom_call.1} parent=63 // pred_region
          %380 = dma.done [#allocation6], 2048
        $region72: #{tpu_custom_call.1} parent=63 // pred_fallthru
          _
        %s381 = smul.u32 2, %s27
        %p382 = scmp.lt.s32.totalorder %s381, 3
        %s383 = scalar_select %p382, %s381, 3
        %s384 = smul.addr %s383, 8
        %s385 = scalar_lea.vmem %s0, %s384
        %p386 = pneg %p48
        %p387 = pneg %p45
        %p388 = pneg %p69
        %p389 = pneg %p66
        %p390 = pneg %p90
        %p391 = pneg %p87
        %p392 = pneg %p111
        %p393 = pneg %p108
        %p394 = pneg %p132
        %p395 = pneg %p129
        %p396 = pneg %p153
        %p397 = pneg %p150
        %p398 = pneg %p174
        %p399 = pneg %p171
        %p400 = pneg %p195
        %p401 = pneg %p192
        %p402 = pneg %p216
        %p403 = pneg %p213
        %p404 = pneg %p237
        %p405 = pneg %p234
        %p406 = pneg %p258
        %p407 = pneg %p255
        %p408 = pneg %p284
        %p409 = pneg %p281
        %s410 = sand.u32 %s271, 1
        %s411 = scalar_lea.sflag [#allocation4], %s410
        %s412 = sand.u32 %s271, 1
        %s413 = smul.addr %s412, 32
        %s414 = scalar_lea.vmem [#allocation7], %s413
        %s415 = smul.u32 2, %s27
        %p416 = scmp.lt.s32.totalorder %s415, 3
        %s417 = scalar_select %p416, %s415, 3
        %s418 = smul.addr %s417, 8
        %s419 = scalar_lea.vmem %s0, %s418
        %s420 = smul.u32 2, %s27
        %s421 = smul.u32 2, %s27
        %v423 = vld [vmem:[%s419] sm:$0xff]
        %v424 = vld [vmem:[%s419 + $0x8] sm:$0xff]
        %v425 = vpack.c.bf16 %v424, %v423
        %v426 = vld [vmem:[%s1] sm:$0xf]
        %v427 = vld [vmem:[%s1 + $0x4] sm:$0xf]
        %v428 = vld [vmem:[%s2] sm:$0x1]
        %v430 = vperm.slane %v428, 0
        %v434 = vunpack.c.l.b16 %v426
        %v435 = vunpack.c.l.b16 %v427
        %v436 = vpack.c.b16 %v435, %v434
        %vm438 = vcmask 130048
        %v440 = vsel %vm438, %v425, 0
        %442 = vmatpush.bf16.msra.mxu0 0
        %443 = vmatpush.bf16.msra.mxu0 0
        %444 = vmatpush.bf16.msra.mxu0 0
        %445 = vmatpush.bf16.msra.mxu0 0
        %446 = vmatpush.bf16.msra.mxu0 0
        %447 = vmatpush.bf16.msra.mxu0 0
        %448 = vmatpush.bf16.msra.mxu0 0
        %449 = vmatpush.bf16.msra.mxu0 %v436
        %450 = vmatmul.bf16.gmra.mxu0 %v440
        %v451 = vpop.f32.mrf.mxu0
        %v452 = vadd.f32 %v430, %v451
        %v453 = vpop.f32.mrf.mxu0
        %v454 = vadd.f32 %v430, %v453
        %455 = vdwg.mxu0
        %v456 = vmax.f32 %v452, 0.0
        %v457 = vmax.f32 %v454, 0.0
        %v458 = vld [vmem:[%s3] sm:$0x1]
        %v460 = vperm.slane %v458, 0
        %v462 = vmul.f32 %v456, %v460
        %v463 = vmul.f32 %v457, %v460
        %v464 = vld [vmem:[%s4] sm:$0x1]
        %v466 = vperm.slane %v464, 0
        %v468 = vadd.f32 %v462, %v466
        %v469 = vadd.f32 %v463, %v466
        %v470 = vpack.c.bf16 %v469, %v468
        %v471 = vld [vmem:[#allocation2] sm:$0xf]
        %v472 = vld [vmem:[#allocation2 + $0x4] sm:$0xf]
        %v473 = vld [vmem:[#allocation2 + $0x8] sm:$0xf]
        %v474 = vld [vmem:[#allocation2 + $0xc] sm:$0xf]
        %v475 = vld [vmem:[#allocation2 + $0x10] sm:$0xf]
        %v476 = vld [vmem:[#allocation2 + $0x14] sm:$0xf]
        %v477 = vld [vmem:[#allocation2 + $0x18] sm:$0xf]
        %v478 = vld [vmem:[#allocation2 + $0x1c] sm:$0xf]
        %v479 = vld [vmem:[#allocation2 + $0x20] sm:$0xf]
        %v480 = vld [vmem:[#allocation2 + $0x24] sm:$0xf]
        %v481 = vld [vmem:[#allocation2 + $0x28] sm:$0xf]
        %v482 = vld [vmem:[#allocation2 + $0x2c] sm:$0xf]
        %v483 = vld [vmem:[#allocation2 + $0x30] sm:$0xf]
        %v484 = vld [vmem:[#allocation2 + $0x34] sm:$0xf]
        %v485 = vld [vmem:[#allocation2 + $0x38] sm:$0xf]
        %v486 = vld [vmem:[#allocation2 + $0x3c] sm:$0xf]
        %v487 = vld [vmem:[%s6] sm:$0x1]
        %v489 = vperm.slane %v487, 0
        %v507 = vunpack.c.l.b16 %v471
        %v508 = vunpack.c.l.b16 %v472
        %v509 = vunpack.c.l.b16 %v473
        %v510 = vunpack.c.l.b16 %v474
        %v511 = vunpack.c.l.b16 %v475
        %v512 = vunpack.c.l.b16 %v476
        %v513 = vunpack.c.l.b16 %v477
        %v514 = vunpack.c.l.b16 %v478
        %v515 = vunpack.c.l.b16 %v479
        %v516 = vunpack.c.l.b16 %v480
        %v517 = vunpack.c.l.b16 %v481
        %v518 = vunpack.c.l.b16 %v482
        %v519 = vunpack.c.l.b16 %v483
        %v520 = vunpack.c.l.b16 %v484
        %v521 = vunpack.c.l.b16 %v485
        %v522 = vunpack.c.l.b16 %v486
        %v523 = vpack.c.b16 %v508, %v507
        %v524 = vpack.c.b16 %v510, %v509
        %v525 = vpack.c.b16 %v512, %v511
        %v526 = vpack.c.b16 %v514, %v513
        %v527 = vpack.c.b16 %v516, %v515
        %v528 = vpack.c.b16 %v518, %v517
        %v529 = vpack.c.b16 %v520, %v519
        %v530 = vpack.c.b16 %v522, %v521
        %539 = vmatpush.bf16.msra.mxu0 %v530
        %540 = vmatpush.bf16.msra.mxu0 %v529
        %541 = vmatpush.bf16.msra.mxu0 %v528
        %542 = vmatpush.bf16.msra.mxu0 %v527
        %543 = vmatpush.bf16.msra.mxu0 %v526
        %544 = vmatpush.bf16.msra.mxu0 %v525
        %545 = vmatpush.bf16.msra.mxu0 %v524
        %546 = vmatpush.bf16.msra.mxu0 %v523
        %547 = vmatmul.bf16.gmra.mxu0 %v470
        %v548 = vpop.f32.mrf.mxu0
        %v549 = vadd.f32 %v489, %v548
        %v550 = vpop.f32.mrf.mxu0
        %v551 = vadd.f32 %v489, %v550
        %552 = vdwg.mxu0
        %v553 = vmax.f32 %v549, 0.0
        %v554 = vmax.f32 %v551, 0.0
        %v555 = vld [vmem:[%s7] sm:$0x1]
        %v557 = vperm.slane %v555, 0
        %v559 = vmul.f32 %v553, %v557
        %v560 = vmul.f32 %v554, %v557
        %v561 = vadd.f32 %v468, %v559
        %v562 = vadd.f32 %v469, %v560
        %v563 = vld [vmem:[%s8] sm:$0x1]
        %v565 = vperm.slane %v563, 0
        %v567 = vadd.f32 %v561, %v565
        %v568 = vadd.f32 %v562, %v565
        %v569 = vpack.c.bf16 %v568, %v567
        %s570 = scalar_lea.vmem [#allocation2], 64
        %v571 = vld [vmem:[%s570] sm:$0xf]
        %v572 = vld [vmem:[%s570 + $0x4] sm:$0xf]
        %v573 = vld [vmem:[%s570 + $0x8] sm:$0xf]
        %v574 = vld [vmem:[%s570 + $0xc] sm:$0xf]
        %v575 = vld [vmem:[%s570 + $0x10] sm:$0xf]
        %v576 = vld [vmem:[%s570 + $0x14] sm:$0xf]
        %v577 = vld [vmem:[%s570 + $0x18] sm:$0xf]
        %v578 = vld [vmem:[%s570 + $0x1c] sm:$0xf]
        %v579 = vld [vmem:[%s570 + $0x20] sm:$0xf]
        %v580 = vld [vmem:[%s570 + $0x24] sm:$0xf]
        %v581 = vld [vmem:[%s570 + $0x28] sm:$0xf]
        %v582 = vld [vmem:[%s570 + $0x2c] sm:$0xf]
        %v583 = vld [vmem:[%s570 + $0x30] sm:$0xf]
        %v584 = vld [vmem:[%s570 + $0x34] sm:$0xf]
        %v585 = vld [vmem:[%s570 + $0x38] sm:$0xf]
        %v586 = vld [vmem:[%s570 + $0x3c] sm:$0xf]
        %s587 = scalar_lea.vmem %s6, 1
        %v588 = vld [vmem:[%s587] sm:$0x1]
        %v590 = vperm.slane %v588, 0
        %v608 = vunpack.c.l.b16 %v571
        %v609 = vunpack.c.l.b16 %v572
        %v610 = vunpack.c.l.b16 %v573
        %v611 = vunpack.c.l.b16 %v574
        %v612 = vunpack.c.l.b16 %v575
        %v613 = vunpack.c.l.b16 %v576
        %v614 = vunpack.c.l.b16 %v577
        %v615 = vunpack.c.l.b16 %v578
        %v616 = vunpack.c.l.b16 %v579
        %v617 = vunpack.c.l.b16 %v580
        %v618 = vunpack.c.l.b16 %v581
        %v619 = vunpack.c.l.b16 %v582
        %v620 = vunpack.c.l.b16 %v583
        %v621 = vunpack.c.l.b16 %v584
        %v622 = vunpack.c.l.b16 %v585
        %v623 = vunpack.c.l.b16 %v586
        %v624 = vpack.c.b16 %v609, %v608
        %v625 = vpack.c.b16 %v611, %v610
        %v626 = vpack.c.b16 %v613, %v612
        %v627 = vpack.c.b16 %v615, %v614
        %v628 = vpack.c.b16 %v617, %v616
        %v629 = vpack.c.b16 %v619, %v618
        %v630 = vpack.c.b16 %v621, %v620
        %v631 = vpack.c.b16 %v623, %v622
        %640 = vmatpush.bf16.msra.mxu0 %v631
        %641 = vmatpush.bf16.msra.mxu0 %v630
        %642 = vmatpush.bf16.msra.mxu0 %v629
        %643 = vmatpush.bf16.msra.mxu0 %v628
        %644 = vmatpush.bf16.msra.mxu0 %v627
        %645 = vmatpush.bf16.msra.mxu0 %v626
        %646 = vmatpush.bf16.msra.mxu0 %v625
        %647 = vmatpush.bf16.msra.mxu0 %v624
        %648 = vmatmul.bf16.gmra.mxu0 %v569
        %v649 = vpop.f32.mrf.mxu0
        %v650 = vadd.f32 %v590, %v649
        %v651 = vpop.f32.mrf.mxu0
        %v652 = vadd.f32 %v590, %v651
        %653 = vdwg.mxu0
        %v654 = vmax.f32 %v650, 0.0
        %v655 = vmax.f32 %v652, 0.0
        %s656 = scalar_lea.vmem %s7, 1
        %v657 = vld [vmem:[%s656] sm:$0x1]
        %v659 = vperm.slane %v657, 0
        %v661 = vmul.f32 %v654, %v659
        %v662 = vmul.f32 %v655, %v659
        %v663 = vadd.f32 %v567, %v661
        %v664 = vadd.f32 %v568, %v662
        %s665 = scalar_lea.vmem %s8, 1
        %v666 = vld [vmem:[%s665] sm:$0x1]
        %v668 = vperm.slane %v666, 0
        %v670 = vadd.f32 %v663, %v668
        %v671 = vadd.f32 %v664, %v668
        %v672 = vpack.c.bf16 %v671, %v670
        %v673 = vld [vmem:[#allocation5] sm:$0xff]
        %v674 = vld [vmem:[#allocation5 + $0x8] sm:$0xff]
        %v675 = vld [vmem:[#allocation5 + $0x10] sm:$0xff]
        %v676 = vld [vmem:[#allocation5 + $0x18] sm:$0xff]
        %v677 = vld [vmem:[#allocation5 + $0x20] sm:$0xff]
        %v678 = vld [vmem:[#allocation5 + $0x28] sm:$0xff]
        %v679 = vld [vmem:[#allocation5 + $0x30] sm:$0xff]
        %v680 = vld [vmem:[#allocation5 + $0x38] sm:$0xff]
        %v681 = vld [vmem:[#allocation5 + $0x40] sm:$0xff]
        %v682 = vld [vmem:[#allocation5 + $0x48] sm:$0xff]
        %v683 = vld [vmem:[#allocation5 + $0x50] sm:$0xff]
        %v684 = vld [vmem:[#allocation5 + $0x58] sm:$0xff]
        %v685 = vld [vmem:[#allocation5 + $0x60] sm:$0xff]
        %v686 = vld [vmem:[#allocation5 + $0x68] sm:$0xff]
        %v687 = vld [vmem:[#allocation5 + $0x70] sm:$0xff]
        %v688 = vld [vmem:[#allocation5 + $0x78] sm:$0xff]
        %v689 = vld [vmem:[%s10] sm:$0x3]
        %v691 = vperm.slane %v689, 0
        %v692 = vperm.slane %v689, 1
        %v711 = vunpack.c.l.b16 %v673
        %v712 = vunpack.c.h.b16 %v673
        %v713 = vunpack.c.l.b16 %v674
        %v714 = vunpack.c.h.b16 %v674
        %v715 = vunpack.c.l.b16 %v675
        %v716 = vunpack.c.h.b16 %v675
        %v717 = vunpack.c.l.b16 %v676
        %v718 = vunpack.c.h.b16 %v676
        %v719 = vunpack.c.l.b16 %v677
        %v720 = vunpack.c.h.b16 %v677
        %v721 = vunpack.c.l.b16 %v678
        %v722 = vunpack.c.h.b16 %v678
        %v723 = vunpack.c.l.b16 %v679
        %v724 = vunpack.c.h.b16 %v679
        %v725 = vunpack.c.l.b16 %v680
        %v726 = vunpack.c.h.b16 %v680
        %v727 = vunpack.c.l.b16 %v681
        %v728 = vunpack.c.h.b16 %v681
        %v729 = vunpack.c.l.b16 %v682
        %v730 = vunpack.c.h.b16 %v682
        %v731 = vunpack.c.l.b16 %v683
        %v732 = vunpack.c.h.b16 %v683
        %v733 = vunpack.c.l.b16 %v684
        %v734 = vunpack.c.h.b16 %v684
        %v735 = vunpack.c.l.b16 %v685
        %v736 = vunpack.c.h.b16 %v685
        %v737 = vunpack.c.l.b16 %v686
        %v738 = vunpack.c.h.b16 %v686
        %v739 = vunpack.c.l.b16 %v687
        %v740 = vunpack.c.h.b16 %v687
        %v741 = vunpack.c.l.b16 %v688
        %v742 = vunpack.c.h.b16 %v688
        %v743 = vpack.c.b16 %v713, %v711
        %v744 = vpack.c.b16 %v714, %v712
        %v745 = vpack.c.b16 %v717, %v715
        %v746 = vpack.c.b16 %v718, %v716
        %v747 = vpack.c.b16 %v721, %v719
        %v748 = vpack.c.b16 %v722, %v720
        %v749 = vpack.c.b16 %v725, %v723
        %v750 = vpack.c.b16 %v726, %v724
        %v751 = vpack.c.b16 %v729, %v727
        %v752 = vpack.c.b16 %v730, %v728
        %v753 = vpack.c.b16 %v733, %v731
        %v754 = vpack.c.b16 %v734, %v732
        %v755 = vpack.c.b16 %v737, %v735
        %v756 = vpack.c.b16 %v738, %v736
        %v757 = vpack.c.b16 %v741, %v739
        %v758 = vpack.c.b16 %v742, %v740
        %775 = vmatpush.bf16.msra.mxu0 %v757
        %776 = vmatpush.bf16.msra.mxu0 %v755
        %777 = vmatpush.bf16.msra.mxu0 %v753
        %778 = vmatpush.bf16.msra.mxu0 %v751
        %779 = vmatpush.bf16.msra.mxu0 %v749
        %780 = vmatpush.bf16.msra.mxu0 %v747
        %781 = vmatpush.bf16.msra.mxu0 %v745
        %782 = vmatpush.bf16.msra.mxu0 %v743
        %783 = vmatmul.bf16.gmra.mxu0 %v672
        %v784 = vpop.f32.mrf.mxu0
        %v785 = vadd.f32 %v691, %v784
        %v786 = vpop.f32.mrf.mxu0
        %v787 = vadd.f32 %v691, %v786
        %788 = vdwg.mxu0
        %789 = vmatpush.bf16.msra.mxu0 %v758
        %790 = vmatpush.bf16.msra.mxu0 %v756
        %791 = vmatpush.bf16.msra.mxu0 %v754
        %792 = vmatpush.bf16.msra.mxu0 %v752
        %793 = vmatpush.bf16.msra.mxu0 %v750
        %794 = vmatpush.bf16.msra.mxu0 %v748
        %795 = vmatpush.bf16.msra.mxu0 %v746
        %796 = vmatpush.bf16.msra.mxu0 %v744
        %797 = vmatmul.bf16.gmra.mxu0 %v672
        %v798 = vpop.f32.mrf.mxu0
        %v799 = vadd.f32 %v692, %v798
        %v800 = vpop.f32.mrf.mxu0
        %v801 = vadd.f32 %v692, %v800
        %802 = vdwg.mxu0
        %803 = vst [vmem:[%s414] sm:$0xff] %v785
        %804 = vst [vmem:[%s414 + $0x10] sm:$0xff] %v787
        %v805 = vmax.f32 %v799, 0.0
        %v806 = vmax.f32 %v801, 0.0
        %vm807 = vcmp.ne.f32.partialorder %v799, %v799
        %vm808 = vcmp.ne.f32.partialorder %v801, %v801
        %v809 = vadd.f32 %v799, 0.0
        %v810 = vadd.f32 %v801, 0.0
        %v811 = vand.u32 2147483647, %v799
        %v812 = vand.u32 2147483647, %v801
        %v813 = vsub.f32 0.0, %v811
        %v814 = vsub.f32 0.0, %v812
        %v815 = vmul.f32 %v813, 1.442695
        %v816 = vpow.pop %v815
        %v817 = vmul.f32 %v814, 1.442695
        %v818 = vpow.pop %v817
        %v819 = vadd.f32 %v816, 1.0
        %v820 = vlog2.pop %v819
        %v821 = vmul.f32 %v820, 0.6931472
        %v822 = vmul.f32 -0.5, %v816
        %v823 = vadd.f32 %v822, 1.0
        %v824 = vmul.f32 %v823, %v816
        %v825 = vand.u32 2147483647, %v816
        %vm826 = vcmp.lt.f32.partialorder %v825, 0.0004427343
        %v827 = vsel %vm826, %v824, %v821
        %v828 = vadd.f32 %v818, 1.0
        %v829 = vlog2.pop %v828
        %v830 = vmul.f32 %v829, 0.6931472
        %v831 = vmul.f32 -0.5, %v818
        %v832 = vadd.f32 %v831, 1.0
        %v833 = vmul.f32 %v832, %v818
        %v834 = vand.u32 2147483647, %v818
        %vm835 = vcmp.lt.f32.partialorder %v834, 0.0004427343
        %v836 = vsel %vm835, %v833, %v830
        %v837 = vadd.f32 %v805, %v827
        %v838 = vadd.f32 %v806, %v836
        %v839 = vsel %vm807, %v809, %v837
        %v840 = vsel %vm808, %v810, %v838
        %841 = vst [vmem:[%s414 + $0x8] sm:$0xff] %v839
        %842 = vst [vmem:[%s414 + $0x18] sm:$0xff] %v840
        %s843 = sand.u32 %s271, 1
        %s844 = scalar_lea.sflag [#allocation4], %s843
        %s845 = sand.u32 %s271, 1
        %s846 = smul.addr %s845, 32
        %s847 = scalar_lea.vmem [#allocation7], %s846
        // Predicated region
        $region73: #{tpu_custom_call.1} parent=63 // pred_check
          %p848 = pneg %p281
        $region74: #{tpu_custom_call.1} parent=63 // pred_check_branch
          %850 = sbr.rel (%p848) target = $region76
        $region75: #{tpu_custom_call.1} parent=63 // pred_region
          %s851 = smul.u32 2, %s27
          %853 = vsyncadd %s844, 0
          %s854 = smul.addr %s851, 2
          %s855 = smul.addr %s854, 8
          %s856 = scalar_lea.hbm %s11, %s855
          %s857 = sshll.u32 %s847, 4
          %s858 = int_to_ptr.vmem [resolvable:$true] %s857
          %s859 = sshll.u32 %s856, 4
          %s860 = int_to_ptr.hbm [resolvable:$true] %s859
          %865 = dma.vmem_to_hbm [thread:$0]  %s858, 512, %s860, %s844, 256, 256, 16
        $region76: #{tpu_custom_call.1} parent=63 // pred_fallthru
          _
      $region64: #{tpu_custom_call.1} parent=5 // pred_fallthru
        _
      %p866 = scmp.le.s32.totalorder 2, %s22
      // Predicated region
      $region77: #{tpu_custom_call.1} parent=5 // pred_check
        %p867 = pneg %p866
      $region78: #{tpu_custom_call.1} parent=5 // pred_check_branch
        %869 = sbr.rel (%p867) target = $region80
      $region79: #{tpu_custom_call.1} parent=5 // pred_region
        %s870 = ssub.s32 %s22, 2
        // Predicated region
        $region81: #{tpu_custom_call.1} parent=79 // pred_check
          %p871 = pneg %p287
        $region82: #{tpu_custom_call.1} parent=79 // pred_check_branch
          %873 = sbr.rel (%p871) target = $region84
        $region83: #{tpu_custom_call.1} parent=79 // pred_region
          %s874 = sand.u32 %s272, 1
          %s875 = scalar_lea.sflag [#allocation4], %s874
          %s876 = sand.u32 %s272, 1
          %s877 = smul.addr %s876, 32
          %s878 = scalar_lea.vmem [#allocation7], %s877
          %880 = dma.done %s875, 512
        $region84: #{tpu_custom_call.1} parent=79 // pred_fallthru
          _
      $region80: #{tpu_custom_call.1} parent=5 // pred_fallthru
        _
    $region6: #{tpu_custom_call.1} parent=1 // loop_footer
      %s26 = sadd.s32 1, %s22
    $region7: #{tpu_custom_call.1} parent=1 // loop_footer_branch
      %21 = sbr.rel target = $region3
    $region8: #{tpu_custom_call.1} parent=1 // loop_exit
      _
    %881 = vsyncpa [#allocation3], 1
    %s882 = scalar_lea.sflag [#allocation3], 1
    %883 = vsyncpa %s882, 1
    %884 = vsyncpa [#allocation6], 1
    %885 = vsyncpa [#allocation4], 1
    %s886 = scalar_lea.sflag [#allocation4], 1
    %887 = vsyncpa %s886, 1

</llo_original>
